<compile_context>
chip_gen: v7x
topology: tpu7x:2x2x1
jax: 0.10.0
libtpu: 0.0.40
codegen_flags: <defaults>
</compile_context>

<pallas_src>
import functools

import jax
import jax.numpy as jnp
from jax.experimental import pallas as pl
from jax.experimental.pallas import tpu as pltpu

LANE = 128
SUBLANE = 8


def _round_up(n, m):
    return ((n + m - 1) // m) * m


# ----------------------------------------------------------------------------
# Pallas kernel: one tile of NB whole images (R = NB*H*W rows) per grid step.
# ----------------------------------------------------------------------------
def bottleneck_kernel(x_ref, w1sc_ref, b1_ref, bsc_ref, w2_ref, b2_ref,
                      w3_ref, b3_ref, o_ref, pad_ref):
    nb, hp2, wpad, pp = pad_ref.shape          # halo scratch (NB, H+2, Wpad, Pp)
    h = hp2 - 2
    r = o_ref.shape[0]                         # rows in this tile (= nb*h*w)
    w = r // (nb * h)
    rp = nb * h * wpad                         # rows in padded-W working space
    cdt = w1sc_ref.dtype                       # MXU input dtype (f32 or bf16)

    xm = x_ref[...].astype(cdt)                # (R, Cinp), K/lane-dense

    # ---- fused conv1 (1x1) + projection shortcut: one MXU pass -------------
    t = jnp.dot(xm, w1sc_ref[...], preferred_element_type=jnp.float32)
    out1 = jnp.maximum(t[:, :pp] + b1_ref[...], 0.0)        # (R, Pp)  f32
    # Shortcut lives in the already VMEM-resident output block instead of a
    # separate f32 temp: removes an R x Cp live range across conv2 / conv3.
    o_ref[...] = (t[:, pp:] + bsc_ref[...]).astype(o_ref.dtype)

    # ---- conv2 (3x3, pad=1, stride=1) + bn2 + relu --------------------------
    # Zero the halo border, then write out1 once into the interior.  The
    # border is re-zeroed every step on purpose: with a "parallel" grid each
    # TensorCore owns a private scratch and only one core ever runs
    # program_id == 0, so gating the zeroing on it would be unsafe.
    pad_ref[:, 0:1, :, :] = jnp.zeros((nb, 1, wpad, pp), cdt)
    pad_ref[:, h + 1:h + 2, :, :] = jnp.zeros((nb, 1, wpad, pp), cdt)
    pad_ref[:, :, 0:1, :] = jnp.zeros((nb, hp2, 1, pp), cdt)
    pad_ref[:, :, w + 1:wpad, :] = jnp.zeros((nb, hp2, wpad - w - 1, pp), cdt)
    pad_ref[:, 1:h + 1, 1:w + 1, :] = out1.reshape(nb, h, w, pp).astype(cdt)

    # Per dy: ONE tile-aligned (wpad % 8 == 0) full-width slice of the scratch
    # is shared by the three dx taps -> 9 dense MXU dots with no operand
    # copies.  The per-dx results are accumulated over dy and re-aligned only
    # once at the end via three interior slices of the f32 accumulators.
    accs = [None, None, None]
    for dy in range(3):
        lhs = pad_ref[:, dy:dy + h, :, :].reshape(rp, pp)
        for dx in range(3):
            d = jnp.dot(lhs, w2_ref[dy, dx],
                        preferred_element_type=jnp.float32)
            accs[dx] = d if accs[dx] is None else accs[dx] + d
    conv2 = None
    for dx in range(3):
        # output pixel x takes the dx-tap result at padded column x + dx
        part = accs[dx].reshape(nb, h, wpad, pp)[:, :, dx:dx + w, :]
        part = part.reshape(r, pp)
        conv2 = part if conv2 is None else conv2 + part
    out2 = jnp.maximum(conv2 + b2_ref[...], 0.0)             # (R, Pp)  f32

    # ---- conv3 (1x1) + bn3 + residual add + relu ----------------------------
    out3 = jnp.dot(out2.astype(cdt), w3_ref[...],
                   preferred_element_type=jnp.float32) + b3_ref[...]
    o_ref[...] = jnp.maximum(out3 + o_ref[...].astype(jnp.float32),
                             0.0).astype(o_ref.dtype)


# ----------------------------------------------------------------------------
# Wrapper: pads channels to lane width, fuses weights, tiles the batch.
# ----------------------------------------------------------------------------
@functools.partial(jax.jit, static_argnames=("use_bf16",))
def bottleneck_forward(x, w1, b1, w2, b2, w3, b3, wsc, bsc, use_bf16=False):
    N, H, W, Cin = x.shape
    P = w1.shape[1]
    Cout = w3.shape[1]
    Cinp = _round_up(Cin, LANE)                # K / input-lane dim
    Pp = _round_up(P, LANE)
    Cp = _round_up(Cout, LANE)
    Wpad = _round_up(W + 2, SUBLANE)           # halo width padded -> aligned dy slices
    wdt = jnp.bfloat16 if use_bf16 else jnp.float32
    wbytes = 2 if use_bf16 else 4

    def pad2(a, rows, cols):
        return jnp.pad(a, ((0, rows - a.shape[0]), (0, cols - a.shape[1])))

    # conv1 + shortcut fused weight (Cinp, Pp+Cp); biases stay f32.
    w1sc = jnp.concatenate([pad2(w1, Cinp, Pp), pad2(wsc, Cinp, Cp)],
                           axis=1).astype(wdt)
    b1p = pad2(b1, 1, Pp)
    bscp = pad2(bsc, 1, Cp)
    w2p = jnp.pad(w2, ((0, 0), (0, 0), (0, Pp - P), (0, Pp - P))).astype(wdt)
    b2p = pad2(b2, 1, Pp)
    w3p = pad2(w3, Pp, Cp).astype(wdt)
    b3p = pad2(b3, 1, Cp)

    # Lane/K-dense activations: pad Cin up to a multiple of 128 as well.
    x2d = pad2(x.reshape(N * H * W, Cin), N * H * W, Cinp)

    # ---- tile selection: whole images per step, grid >= 2, fits VMEM -------
    rows_per_img = H * W

    def step_vmem_bytes(nb):
        r = nb * rows_per_img
        rp = nb * H * Wpad
        blocks = 2 * (r * Cinp * 4 + r * Cp * 4)                 # dbl-buffered in/out
        weights = 2 * (Cinp * (Pp + Cp) + 9 * Pp * Pp + Pp * Cp) * wbytes
        scratch = nb * (H + 2) * Wpad * Pp * wbytes
        live = (r * (Pp + Cp) + 4 * rp * Pp + 2 * r * Pp) * 4    # t, accs, lhs, out2
        return blocks + weights + scratch + live

    VMEM_BUDGET = 40 * 1024 * 1024
    min_grid = 2 if N >= 2 else 1              # never idle a v7x TensorCore
    nb = N                                     # fallback: single full-batch step
    for d in range(1, N + 1):
        if N % d != 0 or N // d < min_grid:
            continue
        if (d * rows_per_img) % SUBLANE != 0:  # keep row tiles sublane-dense
            continue
        if step_vmem_bytes(d) <= VMEM_BUDGET:
            nb = d
    grid = (N // nb,)
    R = nb * rows_per_img

    vmem_limit = int(min(max(step_vmem_bytes(nb) + 8 * 1024 * 1024,
                             32 * 1024 * 1024), 48 * 1024 * 1024))

    weight_elems = Cinp * (Pp + Cp) + 9 * Pp * Pp + Pp * Cp
    flops = 2 * (N * H * W * (Cinp * (Pp + Cp) + Pp * Cp)
                 + N * H * Wpad * 9 * Pp * Pp)
    bytes_accessed = (N * H * W * (Cinp + Cp) * 4
                      + weight_elems * wbytes + (2 * Pp + 2 * Cp) * 4)

    out2d = pl.pallas_call(
        bottleneck_kernel,
        out_shape=jax.ShapeDtypeStruct((N * H * W, Cp), jnp.float32),
        grid_spec=pltpu.PrefetchScalarGridSpec(
            num_scalar_prefetch=0,
            grid=grid,
            in_specs=[
                pl.BlockSpec((R, Cinp), lambda b: (b, 0)),
                pl.BlockSpec(w1sc.shape, lambda b: (0, 0)),
                pl.BlockSpec(b1p.shape, lambda b: (0, 0)),
                pl.BlockSpec(bscp.shape, lambda b: (0, 0)),
                pl.BlockSpec(w2p.shape, lambda b: (0, 0, 0, 0)),
                pl.BlockSpec(b2p.shape, lambda b: (0, 0)),
                pl.BlockSpec(w3p.shape, lambda b: (0, 0)),
                pl.BlockSpec(b3p.shape, lambda b: (0, 0)),
            ],
            out_specs=pl.BlockSpec((R, Cp), lambda b: (b, 0)),
            scratch_shapes=[pltpu.VMEM((nb, H + 2, Wpad, Pp), wdt)],
        ),
        compiler_params=pltpu.CompilerParams(
            dimension_semantics=("parallel",),
            vmem_limit_bytes=vmem_limit,
        ),
        cost_estimate=pl.CostEstimate(
            flops=flops, transcendentals=0, bytes_accessed=bytes_accessed),
    )(x2d, w1sc, b1p, bscp, w2p, b2p, w3p, b3p)

    # Strip channel padding outside the kernel.
    return out2d.reshape(N, H, W, Cp)[..., :Cout]


# ----------------------------------------------------------------------------
# Parameter construction (deterministic) + BN folding
# ----------------------------------------------------------------------------
def fold_bn(w, gamma, beta, mean, var, eps=1e-5):
    """Fold inference-mode BatchNorm into a conv weight (out-channel last)."""
    scale = gamma / jnp.sqrt(var + eps)
    w_f = w * scale
    b_f = (beta - mean * scale).reshape(1, -1)
    return w_f, b_f


def make_params(key, in_planes, planes, expansion=4):
    cout = expansion * planes
    ks = jax.random.split(key, 12)
    w1 = jax.random.normal(ks[0], (in_planes, planes), jnp.float32) * 0.1
    w2 = jax.random.normal(ks[1], (3, 3, planes, planes), jnp.float32) * 0.1
    w3 = jax.random.normal(ks[2], (planes, cout), jnp.float32) * 0.1
    wsc = jax.random.normal(ks[3], (in_planes, cout), jnp.float32) * 0.1

    def bn(kg, kb, c):
        gamma = 1.0 + 0.1 * jax.random.normal(kg, (c,), jnp.float32)
        beta = 0.1 * jax.random.normal(kb, (c,), jnp.float32)
        mean = jnp.zeros((c,), jnp.float32)
        var = jnp.ones((c,), jnp.float32)
        return gamma, beta, mean, var

    g1, be1, m1, v1 = bn(ks[4], ks[5], planes)
    g2, be2, m2, v2 = bn(ks[6], ks[7], planes)
    g3, be3, m3, v3 = bn(ks[8], ks[9], cout)
    gs, bes, ms, vs = bn(ks[10], ks[11], cout)

    w1f, b1f = fold_bn(w1, g1, be1, m1, v1)
    w2f, b2f = fold_bn(w2, g2, be2, m2, v2)
    w3f, b3f = fold_bn(w3, g3, be3, m3, v3)
    wscf, bscf = fold_bn(wsc, gs, bes, ms, vs)
    return (w1f, b1f, w2f, b2f, w3f, b3f, wscf, bscf)


# ----------------------------------------------------------------------------
# Pure-JAX reference (for validation)
# ----------------------------------------------------------------------------
def reference_forward(x, w1, b1, w2, b2, w3, b3, wsc, bsc):
    def conv(inp, w_hwio, pad):
        return jax.lax.conv_general_dilated(
            inp, w_hwio, (1, 1), pad,
            dimension_numbers=("NHWC", "HWIO", "NHWC"))

    o = conv(x, w1[None, None], "VALID") + b1
    o = jax.nn.relu(o)
    o = conv(o, w2, "SAME") + b2
    o = jax.nn.relu(o)
    o = conv(o, w3[None, None], "VALID") + b3
    sc = conv(x, wsc[None, None], "VALID") + bsc
    return jax.nn.relu(o + sc)


if __name__ == "__main__":
    key = jax.random.PRNGKey(0)
    kx, kp = jax.random.split(key)

    N, H, W = 2, 8, 8
    in_planes, planes = 16, 8      # expansion*planes = 32 != in_planes -> proj shortcut

    # NHWC input (PyTorch NCHW would be x.transpose(0, 2, 3, 1))
    x = jax.random.normal(kx, (N, H, W, in_planes), jnp.float32)
    params = make_params(kp, in_planes, planes)

    ref = reference_forward(x, *params)

    # f32 MXU path (exact vs reference)
    out = jax.block_until_ready(bottleneck_forward(x, *params, use_bf16=False))
    assert out.shape == (N, H, W, 4 * planes)
    assert jnp.allclose(out, ref, atol=1e-4, rtol=1e-4), "f32 mismatch vs reference"

    # bf16-MXU path (useful on v5e/v6e/v7x; f32 accumulation) -> looser tolerance
    out_bf16 = jax.block_until_ready(bottleneck_forward(x, *params, use_bf16=True))
    assert out_bf16.shape == (N, H, W, 4 * planes)
    assert jnp.allclose(out_bf16, ref, atol=1e-1, rtol=1e-1), "bf16 mismatch vs reference"

    print("KERNEL_OK")
</pallas_src>

<mosaic_0001>
module attributes {stable_mosaic.version = 11 : i64} {
  func.func @bottleneck_kernel(%arg0: i32, %arg1: memref<64x128xf32, #tpu.memory_space<vmem>>, %arg2: memref<128x256xf32, #tpu.memory_space<vmem>>, %arg3: memref<1x128xf32, #tpu.memory_space<vmem>>, %arg4: memref<1x128xf32, #tpu.memory_space<vmem>>, %arg5: memref<3x3x128x128xf32, #tpu.memory_space<vmem>>, %arg6: memref<1x128xf32, #tpu.memory_space<vmem>>, %arg7: memref<128x128xf32, #tpu.memory_space<vmem>>, %arg8: memref<1x128xf32, #tpu.memory_space<vmem>>, %arg9: memref<64x128xf32, #tpu.memory_space<vmem>>, %arg10: memref<1x10x16x128xf32, #tpu.memory_space<vmem>>) attributes {dimension_semantics = [#tpu.dimension_semantics<parallel>], iteration_bounds = array<i64: 2>, scalar_prefetch = 0 : i64, scratch_operands = 1 : i64, tpu.core_type = #tpu.core_type<tc>, window_params = [{transform_indices = @transform_0, window_bounds = array<i64: 64, 128>}, {pipeline_mode = #tpu.pipeline_mode<synchronous>, transform_indices = @transform_1, window_bounds = array<i64: 128, 256>}, {pipeline_mode = #tpu.pipeline_mode<synchronous>, transform_indices = @transform_2, window_bounds = array<i64: 1, 128>}, {pipeline_mode = #tpu.pipeline_mode<synchronous>, transform_indices = @transform_3, window_bounds = array<i64: 1, 128>}, {pipeline_mode = #tpu.pipeline_mode<synchronous>, transform_indices = @transform_4, window_bounds = array<i64: 3, 3, 128, 128>}, {pipeline_mode = #tpu.pipeline_mode<synchronous>, transform_indices = @transform_5, window_bounds = array<i64: 1, 128>}, {pipeline_mode = #tpu.pipeline_mode<synchronous>, transform_indices = @transform_6, window_bounds = array<i64: 128, 128>}, {pipeline_mode = #tpu.pipeline_mode<synchronous>, transform_indices = @transform_7, window_bounds = array<i64: 1, 128>}, {transform_indices = @transform_8, window_bounds = array<i64: 64, 128>}]} {
    %c0 = arith.constant 0 : index
    %c0_0 = arith.constant 0 : index
    %0 = vector.load %arg1[%c0, %c0_0] : memref<64x128xf32, #tpu.memory_space<vmem>>, vector<64x128xf32>
    %c0_1 = arith.constant 0 : index
    %c0_2 = arith.constant 0 : index
    %1 = vector.load %arg2[%c0_1, %c0_2] : memref<128x256xf32, #tpu.memory_space<vmem>>, vector<128x256xf32>
    %cst = arith.constant dense<0.000000e+00> : vector<64x256xf32>
    %2 = tpu.matmul %0, %1, %cst {dimension_numbers = #tpu.dot_dimension_numbers<[1], [0], [0], [1], [0, 0, 1, 1], [], []>} : vector<64x128xf32>, vector<128x256xf32>, vector<64x256xf32> -> vector<64x256xf32>
    %3 = vector.extract_strided_slice %2 {offsets = [0, 0], sizes = [64, 128], strides = [1, 1]} : vector<64x256xf32> to vector<64x128xf32>
    %c0_3 = arith.constant 0 : index
    %c0_4 = arith.constant 0 : index
    %4 = vector.load %arg3[%c0_3, %c0_4] : memref<1x128xf32, #tpu.memory_space<vmem>>, vector<1x128xf32>
    %5 = vector.broadcast %4 : vector<1x128xf32> to vector<64x128xf32>
    %6 = arith.addf %3, %5 : vector<64x128xf32>
    %cst_5 = arith.constant 0.000000e+00 : f32
    %7 = vector.broadcast %cst_5 : f32 to vector<64x128xf32>
    %8 = arith.maximumf %6, %7 : vector<64x128xf32>
    %9 = vector.extract_strided_slice %2 {offsets = [0, 128], sizes = [64, 128], strides = [1, 1]} : vector<64x256xf32> to vector<64x128xf32>
    %c0_6 = arith.constant 0 : index
    %c0_7 = arith.constant 0 : index
    %10 = vector.load %arg4[%c0_6, %c0_7] : memref<1x128xf32, #tpu.memory_space<vmem>>, vector<1x128xf32>
    %11 = vector.broadcast %10 : vector<1x128xf32> to vector<64x128xf32>
    %12 = arith.addf %9, %11 : vector<64x128xf32>
    %c0_8 = arith.constant 0 : index
    %c0_9 = arith.constant 0 : index
    %13 = vector.load %arg9[%c0_8, %c0_9] : memref<64x128xf32, #tpu.memory_space<vmem>>, vector<64x128xf32>
    tpu.vector_store %arg9[%c0_8, %c0_9], %12 {strides = array<i32>} : memref<64x128xf32, #tpu.memory_space<vmem>>, vector<64x128xf32>,
    %cst_10 = arith.constant 0.000000e+00 : f32
    %14 = vector.broadcast %cst_10 : f32 to vector<1x1x16x128xf32>
    %c0_11 = arith.constant 0 : index
    %c0_12 = arith.constant 0 : index
    %c0_13 = arith.constant 0 : index
    %c0_14 = arith.constant 0 : index
    %15 = vector.load %arg10[%c0_11, %c0_12, %c0_13, %c0_14] : memref<1x10x16x128xf32, #tpu.memory_space<vmem>>, vector<1x1x16x128xf32>
    tpu.vector_store %arg10[%c0_11, %c0_12, %c0_13, %c0_14], %14 {strides = array<i32>} : memref<1x10x16x128xf32, #tpu.memory_space<vmem>>, vector<1x1x16x128xf32>,
    %cst_15 = arith.constant 0.000000e+00 : f32
    %16 = vector.broadcast %cst_15 : f32 to vector<1x1x16x128xf32>
    %c0_16 = arith.constant 0 : index
    %c9 = arith.constant 9 : index
    %c0_17 = arith.constant 0 : index
    %c0_18 = arith.constant 0 : index
    %17 = vector.load %arg10[%c0_16, %c9, %c0_17, %c0_18] : memref<1x10x16x128xf32, #tpu.memory_space<vmem>>, vector<1x1x16x128xf32>
    tpu.vector_store %arg10[%c0_16, %c9, %c0_17, %c0_18], %16 {strides = array<i32>} : memref<1x10x16x128xf32, #tpu.memory_space<vmem>>, vector<1x1x16x128xf32>,
    %cst_19 = arith.constant 0.000000e+00 : f32
    %18 = vector.broadcast %cst_19 : f32 to vector<1x10x1x128xf32>
    %c0_20 = arith.constant 0 : index
    %c0_21 = arith.constant 0 : index
    %c0_22 = arith.constant 0 : index
    %c0_23 = arith.constant 0 : index
    %19 = vector.load %arg10[%c0_20, %c0_21, %c0_22, %c0_23] : memref<1x10x16x128xf32, #tpu.memory_space<vmem>>, vector<1x10x1x128xf32>
    tpu.vector_store %arg10[%c0_20, %c0_21, %c0_22, %c0_23], %18 {strides = array<i32>} : memref<1x10x16x128xf32, #tpu.memory_space<vmem>>, vector<1x10x1x128xf32>,
    %cst_24 = arith.constant 0.000000e+00 : f32
    %20 = vector.broadcast %cst_24 : f32 to vector<1x10x7x128xf32>
    %c0_25 = arith.constant 0 : index
    %c0_26 = arith.constant 0 : index
    %c9_27 = arith.constant 9 : index
    %c0_28 = arith.constant 0 : index
    %21 = vector.load %arg10[%c0_25, %c0_26, %c9_27, %c0_28] : memref<1x10x16x128xf32, #tpu.memory_space<vmem>>, vector<1x10x7x128xf32>
    tpu.vector_store %arg10[%c0_25, %c0_26, %c9_27, %c0_28], %20 {strides = array<i32>} : memref<1x10x16x128xf32, #tpu.memory_space<vmem>>, vector<1x10x7x128xf32>,
    %22 = vector.shape_cast %8 : vector<64x128xf32> to vector<1x8x8x128xf32>
    %c0_29 = arith.constant 0 : index
    %c1 = arith.constant 1 : index
    %c1_30 = arith.constant 1 : index
    %c0_31 = arith.constant 0 : index
    %23 = vector.load %arg10[%c0_29, %c1, %c1_30, %c0_31] : memref<1x10x16x128xf32, #tpu.memory_space<vmem>>, vector<1x8x8x128xf32>
    tpu.vector_store %arg10[%c0_29, %c1, %c1_30, %c0_31], %22 {strides = array<i32>} : memref<1x10x16x128xf32, #tpu.memory_space<vmem>>, vector<1x8x8x128xf32>,
    %c0_32 = arith.constant 0 : index
    %c0_33 = arith.constant 0 : index
    %c0_34 = arith.constant 0 : index
    %c0_35 = arith.constant 0 : index
    %24 = vector.load %arg10[%c0_32, %c0_33, %c0_34, %c0_35] : memref<1x10x16x128xf32, #tpu.memory_space<vmem>>, vector<1x8x16x128xf32>
    %25 = vector.shape_cast %24 : vector<1x8x16x128xf32> to vector<128x128xf32>
    %c0_36 = arith.constant 0 : index
    %c0_37 = arith.constant 0 : index
    %c0_38 = arith.constant 0 : index
    %c0_39 = arith.constant 0 : index
    %26 = vector.load %arg5[%c0_36, %c0_37, %c0_38, %c0_39] : memref<3x3x128x128xf32, #tpu.memory_space<vmem>>, vector<1x1x128x128xf32>
    %27 = vector.shape_cast %26 : vector<1x1x128x128xf32> to vector<128x128xf32>
    %cst_40 = arith.constant dense<0.000000e+00> : vector<128x128xf32>
    %28 = tpu.matmul %25, %27, %cst_40 {dimension_numbers = #tpu.dot_dimension_numbers<[1], [0], [0], [1], [0, 0, 1, 1], [], []>} : vector<128x128xf32>, vector<128x128xf32>, vector<128x128xf32> -> vector<128x128xf32>
    %c0_41 = arith.constant 0 : index
    %c1_42 = arith.constant 1 : index
    %c0_43 = arith.constant 0 : index
    %c0_44 = arith.constant 0 : index
    %29 = vector.load %arg5[%c0_41, %c1_42, %c0_43, %c0_44] : memref<3x3x128x128xf32, #tpu.memory_space<vmem>>, vector<1x1x128x128xf32>
    %30 = vector.shape_cast %29 : vector<1x1x128x128xf32> to vector<128x128xf32>
    %cst_45 = arith.constant dense<0.000000e+00> : vector<128x128xf32>
    %31 = tpu.matmul %25, %30, %cst_45 {dimension_numbers = #tpu.dot_dimension_numbers<[1], [0], [0], [1], [0, 0, 1, 1], [], []>} : vector<128x128xf32>, vector<128x128xf32>, vector<128x128xf32> -> vector<128x128xf32>
    %c0_46 = arith.constant 0 : index
    %c2 = arith.constant 2 : index
    %c0_47 = arith.constant 0 : index
    %c0_48 = arith.constant 0 : index
    %32 = vector.load %arg5[%c0_46, %c2, %c0_47, %c0_48] : memref<3x3x128x128xf32, #tpu.memory_space<vmem>>, vector<1x1x128x128xf32>
    %33 = vector.shape_cast %32 : vector<1x1x128x128xf32> to vector<128x128xf32>
    %cst_49 = arith.constant dense<0.000000e+00> : vector<128x128xf32>
    %34 = tpu.matmul %25, %33, %cst_49 {dimension_numbers = #tpu.dot_dimension_numbers<[1], [0], [0], [1], [0, 0, 1, 1], [], []>} : vector<128x128xf32>, vector<128x128xf32>, vector<128x128xf32> -> vector<128x128xf32>
    %c0_50 = arith.constant 0 : index
    %c1_51 = arith.constant 1 : index
    %c0_52 = arith.constant 0 : index
    %c0_53 = arith.constant 0 : index
    %35 = vector.load %arg10[%c0_50, %c1_51, %c0_52, %c0_53] : memref<1x10x16x128xf32, #tpu.memory_space<vmem>>, vector<1x8x16x128xf32>
    %36 = vector.shape_cast %35 : vector<1x8x16x128xf32> to vector<128x128xf32>
    %c1_54 = arith.constant 1 : index
    %c0_55 = arith.constant 0 : index
    %c0_56 = arith.constant 0 : index
    %c0_57 = arith.constant 0 : index
    %37 = vector.load %arg5[%c1_54, %c0_55, %c0_56, %c0_57] : memref<3x3x128x128xf32, #tpu.memory_space<vmem>>, vector<1x1x128x128xf32>
    %38 = vector.shape_cast %37 : vector<1x1x128x128xf32> to vector<128x128xf32>
    %cst_58 = arith.constant dense<0.000000e+00> : vector<128x128xf32>
    %39 = tpu.matmul %36, %38, %cst_58 {dimension_numbers = #tpu.dot_dimension_numbers<[1], [0], [0], [1], [0, 0, 1, 1], [], []>} : vector<128x128xf32>, vector<128x128xf32>, vector<128x128xf32> -> vector<128x128xf32>
    %40 = arith.addf %28, %39 : vector<128x128xf32>
    %c1_59 = arith.constant 1 : index
    %c1_60 = arith.constant 1 : index
    %c0_61 = arith.constant 0 : index
    %c0_62 = arith.constant 0 : index
    %41 = vector.load %arg5[%c1_59, %c1_60, %c0_61, %c0_62] : memref<3x3x128x128xf32, #tpu.memory_space<vmem>>, vector<1x1x128x128xf32>
    %42 = vector.shape_cast %41 : vector<1x1x128x128xf32> to vector<128x128xf32>
    %cst_63 = arith.constant dense<0.000000e+00> : vector<128x128xf32>
    %43 = tpu.matmul %36, %42, %cst_63 {dimension_numbers = #tpu.dot_dimension_numbers<[1], [0], [0], [1], [0, 0, 1, 1], [], []>} : vector<128x128xf32>, vector<128x128xf32>, vector<128x128xf32> -> vector<128x128xf32>
    %44 = arith.addf %31, %43 : vector<128x128xf32>
    %c1_64 = arith.constant 1 : index
    %c2_65 = arith.constant 2 : index
    %c0_66 = arith.constant 0 : index
    %c0_67 = arith.constant 0 : index
    %45 = vector.load %arg5[%c1_64, %c2_65, %c0_66, %c0_67] : memref<3x3x128x128xf32, #tpu.memory_space<vmem>>, vector<1x1x128x128xf32>
    %46 = vector.shape_cast %45 : vector<1x1x128x128xf32> to vector<128x128xf32>
    %cst_68 = arith.constant dense<0.000000e+00> : vector<128x128xf32>
    %47 = tpu.matmul %36, %46, %cst_68 {dimension_numbers = #tpu.dot_dimension_numbers<[1], [0], [0], [1], [0, 0, 1, 1], [], []>} : vector<128x128xf32>, vector<128x128xf32>, vector<128x128xf32> -> vector<128x128xf32>
    %48 = arith.addf %34, %47 : vector<128x128xf32>
    %c0_69 = arith.constant 0 : index
    %c2_70 = arith.constant 2 : index
    %c0_71 = arith.constant 0 : index
    %c0_72 = arith.constant 0 : index
    %49 = vector.load %arg10[%c0_69, %c2_70, %c0_71, %c0_72] : memref<1x10x16x128xf32, #tpu.memory_space<vmem>>, vector<1x8x16x128xf32>
    %50 = vector.shape_cast %49 : vector<1x8x16x128xf32> to vector<128x128xf32>
    %c2_73 = arith.constant 2 : index
    %c0_74 = arith.constant 0 : index
    %c0_75 = arith.constant 0 : index
    %c0_76 = arith.constant 0 : index
    %51 = vector.load %arg5[%c2_73, %c0_74, %c0_75, %c0_76] : memref<3x3x128x128xf32, #tpu.memory_space<vmem>>, vector<1x1x128x128xf32>
    %52 = vector.shape_cast %51 : vector<1x1x128x128xf32> to vector<128x128xf32>
    %cst_77 = arith.constant dense<0.000000e+00> : vector<128x128xf32>
    %53 = tpu.matmul %50, %52, %cst_77 {dimension_numbers = #tpu.dot_dimension_numbers<[1], [0], [0], [1], [0, 0, 1, 1], [], []>} : vector<128x128xf32>, vector<128x128xf32>, vector<128x128xf32> -> vector<128x128xf32>
    %54 = arith.addf %40, %53 : vector<128x128xf32>
    %c2_78 = arith.constant 2 : index
    %c1_79 = arith.constant 1 : index
    %c0_80 = arith.constant 0 : index
    %c0_81 = arith.constant 0 : index
    %55 = vector.load %arg5[%c2_78, %c1_79, %c0_80, %c0_81] : memref<3x3x128x128xf32, #tpu.memory_space<vmem>>, vector<1x1x128x128xf32>
    %56 = vector.shape_cast %55 : vector<1x1x128x128xf32> to vector<128x128xf32>
    %cst_82 = arith.constant dense<0.000000e+00> : vector<128x128xf32>
    %57 = tpu.matmul %50, %56, %cst_82 {dimension_numbers = #tpu.dot_dimension_numbers<[1], [0], [0], [1], [0, 0, 1, 1], [], []>} : vector<128x128xf32>, vector<128x128xf32>, vector<128x128xf32> -> vector<128x128xf32>
    %58 = arith.addf %44, %57 : vector<128x128xf32>
    %c2_83 = arith.constant 2 : index
    %c2_84 = arith.constant 2 : index
    %c0_85 = arith.constant 0 : index
    %c0_86 = arith.constant 0 : index
    %59 = vector.load %arg5[%c2_83, %c2_84, %c0_85, %c0_86] : memref<3x3x128x128xf32, #tpu.memory_space<vmem>>, vector<1x1x128x128xf32>
    %60 = vector.shape_cast %59 : vector<1x1x128x128xf32> to vector<128x128xf32>
    %cst_87 = arith.constant dense<0.000000e+00> : vector<128x128xf32>
    %61 = tpu.matmul %50, %60, %cst_87 {dimension_numbers = #tpu.dot_dimension_numbers<[1], [0], [0], [1], [0, 0, 1, 1], [], []>} : vector<128x128xf32>, vector<128x128xf32>, vector<128x128xf32> -> vector<128x128xf32>
    %62 = arith.addf %48, %61 : vector<128x128xf32>
    %63 = vector.shape_cast %54 : vector<128x128xf32> to vector<1x8x16x128xf32>
    %64 = vector.extract_strided_slice %63 {offsets = [0, 0, 0, 0], sizes = [1, 8, 8, 128], strides = [1, 1, 1, 1]} : vector<1x8x16x128xf32> to vector<1x8x8x128xf32>
    %65 = vector.shape_cast %64 : vector<1x8x8x128xf32> to vector<64x128xf32>
    %66 = vector.shape_cast %58 : vector<128x128xf32> to vector<1x8x16x128xf32>
    %67 = vector.extract_strided_slice %66 {offsets = [0, 0, 1, 0], sizes = [1, 8, 8, 128], strides = [1, 1, 1, 1]} : vector<1x8x16x128xf32> to vector<1x8x8x128xf32>
    %68 = vector.shape_cast %67 : vector<1x8x8x128xf32> to vector<64x128xf32>
    %69 = arith.addf %65, %68 : vector<64x128xf32>
    %70 = vector.shape_cast %62 : vector<128x128xf32> to vector<1x8x16x128xf32>
    %71 = vector.extract_strided_slice %70 {offsets = [0, 0, 2, 0], sizes = [1, 8, 8, 128], strides = [1, 1, 1, 1]} : vector<1x8x16x128xf32> to vector<1x8x8x128xf32>
    %72 = vector.shape_cast %71 : vector<1x8x8x128xf32> to vector<64x128xf32>
    %73 = arith.addf %69, %72 : vector<64x128xf32>
    %c0_88 = arith.constant 0 : index
    %c0_89 = arith.constant 0 : index
    %74 = vector.load %arg6[%c0_88, %c0_89] : memref<1x128xf32, #tpu.memory_space<vmem>>, vector<1x128xf32>
    %75 = vector.broadcast %74 : vector<1x128xf32> to vector<64x128xf32>
    %76 = arith.addf %73, %75 : vector<64x128xf32>
    %cst_90 = arith.constant 0.000000e+00 : f32
    %77 = vector.broadcast %cst_90 : f32 to vector<64x128xf32>
    %78 = arith.maximumf %76, %77 : vector<64x128xf32>
    %c0_91 = arith.constant 0 : index
    %c0_92 = arith.constant 0 : index
    %79 = vector.load %arg7[%c0_91, %c0_92] : memref<128x128xf32, #tpu.memory_space<vmem>>, vector<128x128xf32>
    %cst_93 = arith.constant dense<0.000000e+00> : vector<64x128xf32>
    %80 = tpu.matmul %78, %79, %cst_93 {dimension_numbers = #tpu.dot_dimension_numbers<[1], [0], [0], [1], [0, 0, 1, 1], [], []>} : vector<64x128xf32>, vector<128x128xf32>, vector<64x128xf32> -> vector<64x128xf32>
    %c0_94 = arith.constant 0 : index
    %c0_95 = arith.constant 0 : index
    %81 = vector.load %arg8[%c0_94, %c0_95] : memref<1x128xf32, #tpu.memory_space<vmem>>, vector<1x128xf32>
    %82 = vector.broadcast %81 : vector<1x128xf32> to vector<64x128xf32>
    %83 = arith.addf %80, %82 : vector<64x128xf32>
    %c0_96 = arith.constant 0 : index
    %c0_97 = arith.constant 0 : index
    %84 = vector.load %arg9[%c0_96, %c0_97] : memref<64x128xf32, #tpu.memory_space<vmem>>, vector<64x128xf32>
    %85 = arith.addf %83, %84 : vector<64x128xf32>
    %cst_98 = arith.constant 0.000000e+00 : f32
    %86 = vector.broadcast %cst_98 : f32 to vector<64x128xf32>
    %87 = arith.maximumf %85, %86 : vector<64x128xf32>
    %c0_99 = arith.constant 0 : index
    %c0_100 = arith.constant 0 : index
    %88 = vector.load %arg9[%c0_99, %c0_100] : memref<64x128xf32, #tpu.memory_space<vmem>>, vector<64x128xf32>
    tpu.vector_store %arg9[%c0_99, %c0_100], %87 {strides = array<i32>} : memref<64x128xf32, #tpu.memory_space<vmem>>, vector<64x128xf32>,
    return
  }
  func.func @transform_0(%arg0: i32) -> (i32, i32) {
    %c0_i32 = arith.constant 0 : i32
    %c0_i32_0 = arith.constant 0 : i32
    return %arg0, %c0_i32 : i32, i32
  }
  func.func @transform_1(%arg0: i32) -> (i32, i32) {
    %c0_i32 = arith.constant 0 : i32
    %c0_i32_0 = arith.constant 0 : i32
    %c0_i32_1 = arith.constant 0 : i32
    return %c0_i32, %c0_i32_0 : i32, i32
  }
  func.func @transform_2(%arg0: i32) -> (i32, i32) {
    %c0_i32 = arith.constant 0 : i32
    %c0_i32_0 = arith.constant 0 : i32
    %c0_i32_1 = arith.constant 0 : i32
    return %c0_i32, %c0_i32_0 : i32, i32
  }
  func.func @transform_3(%arg0: i32) -> (i32, i32) {
    %c0_i32 = arith.constant 0 : i32
    %c0_i32_0 = arith.constant 0 : i32
    %c0_i32_1 = arith.constant 0 : i32
    return %c0_i32, %c0_i32_0 : i32, i32
  }
  func.func @transform_4(%arg0: i32) -> (i32, i32, i32, i32) {
    %c0_i32 = arith.constant 0 : i32
    %c0_i32_0 = arith.constant 0 : i32
    %c0_i32_1 = arith.constant 0 : i32
    %c0_i32_2 = arith.constant 0 : i32
    %c0_i32_3 = arith.constant 0 : i32
    return %c0_i32, %c0_i32_0, %c0_i32_1, %c0_i32_2 : i32, i32, i32, i32
  }
  func.func @transform_5(%arg0: i32) -> (i32, i32) {
    %c0_i32 = arith.constant 0 : i32
    %c0_i32_0 = arith.constant 0 : i32
    %c0_i32_1 = arith.constant 0 : i32
    return %c0_i32, %c0_i32_0 : i32, i32
  }
  func.func @transform_6(%arg0: i32) -> (i32, i32) {
    %c0_i32 = arith.constant 0 : i32
    %c0_i32_0 = arith.constant 0 : i32
    %c0_i32_1 = arith.constant 0 : i32
    return %c0_i32, %c0_i32_0 : i32, i32
  }
  func.func @transform_7(%arg0: i32) -> (i32, i32) {
    %c0_i32 = arith.constant 0 : i32
    %c0_i32_0 = arith.constant 0 : i32
    %c0_i32_1 = arith.constant 0 : i32
    return %c0_i32, %c0_i32_0 : i32, i32
  }
  func.func @transform_8(%arg0: i32) -> (i32, i32) {
    %c0_i32 = arith.constant 0 : i32
    %c0_i32_0 = arith.constant 0 : i32
    return %arg0, %c0_i32 : i32, i32
  }
}

</mosaic_0001>

<llo_original>
// kernel: bottleneck_forward.1
$region0: #{bottleneck_forward.1}
  #allocation0 [shape = 'u32[]', space=smem, size = 0x4, offset = 0x4, fixed_abs, tag = 'smem constant byte address 0x4 - core index']
  #allocation1 [shape = 'u32[144,128]{1,0:T(1,128)}', space=vmem, size = 0x12000, scoped, tag = 'internal scratch']
  #allocation2 [shape = 'f32[1,10,16,128]{3,2,1,0:T(8,128)}', space=vmem, size = 0x14000, scoped, tag = 'scratch operand']
  %s0 = inlined_call_operand.vmem [shape: f32[128,128], index: 0, kind: input, shape index: {}]
  %s1 = inlined_call_operand.vmem [shape: f32[128,256], index: 1, kind: input, shape index: {}]
  %s2 = inlined_call_operand.vmem [shape: f32[1,128], index: 2, kind: input, shape index: {}]
  %s3 = inlined_call_operand.vmem [shape: f32[1,128], index: 3, kind: input, shape index: {}]
  %s4 = inlined_call_operand.vmem [shape: f32[3,3,128,128], index: 4, kind: input, shape index: {}]
  %s5 = inlined_call_operand.vmem [shape: f32[1,128], index: 5, kind: input, shape index: {}]
  %s6 = inlined_call_operand.vmem [shape: f32[128,128], index: 6, kind: input, shape index: {}]
  %s7 = inlined_call_operand.vmem [shape: f32[1,128], index: 7, kind: input, shape index: {}]
  %s8 = inlined_call_operand.hbm [shape: f32[128,128], index: 8, kind: output, shape index: {}]
  %s9 = sld [smem:[#allocation0]]
  $region65: #{bottleneck_forward.1} parent=0
    _
  %s11 = ssub.s32 1, %s9
  %s12 = scalar_select 0, %s11, %s9
  $region1: #{bottleneck_forward.1} parent=0
    #allocation3 [shape = 'u8[65536]{0}', space=vmem, size = 0x10000, scoped, tag = 'output window, operand 0']
    #allocation4 [shape = 's32[2]{0}', space=sflag, size = 0x8, scoped, tag = 'scoped memory for bottleneck_forward.1']
    %13 = vsyncpa [#allocation4], 0
    %s14 = scalar_lea.sflag [#allocation4], 1
    %15 = vsyncpa %s14, 0
    loop: start=0, step=1, limit=4
    $region2: #{bottleneck_forward.1} parent=1 // loop_pre_header
      _
    $region3: #{bottleneck_forward.1} parent=1 // loop_header
      %s17 = sphi 0, %s21
      %p18 = scmp.ge.s32.totalorder %s17, 4
      %s27 = sphi 0, %s29
      %s30 = sphi 0, %s27
      %s31 = sphi 0, %s30
      %s47 = sphi 0, %s31
      %s51 = sphi 0, %s51
      %s53 = sphi 0, %s51
      %s54 = sphi 0, %s53
      %s68 = sphi 0, %s54
      %s72 = sphi 0, %s72
      %s74 = sphi 0, %s72
      %s75 = sphi 0, %s74
      %s89 = sphi 0, %s75
      %s93 = sphi 0, %s93
      %s95 = sphi 0, %s93
      %s96 = sphi 0, %s95
      %s110 = sphi 0, %s96
      %s114 = sphi 0, %s114
      %s116 = sphi 0, %s114
      %s117 = sphi 0, %s116
      %s131 = sphi 0, %s117
      %s135 = sphi 0, %s135
      %s137 = sphi 0, %s135
      %s138 = sphi 0, %s137
      %s152 = sphi 0, %s138
      %s156 = sphi 0, %s156
      %s158 = sphi 0, %s156
      %s159 = sphi 0, %s158
      %s173 = sphi 0, %s159
      %s177 = sphi 0, %s177
      %s179 = sphi 0, %s177
      %s180 = sphi 0, %s179
      %s194 = sphi 0, %s180
      %s200 = sphi 0, %s202
      %s203 = sphi 0, %s200
      %s204 = sphi 0, %s203
      %s220 = sphi 0, %s204
    $region4: #{bottleneck_forward.1} parent=1 // loop_header_branch
      %20 = sbr.rel (%p18) target = $region8
    $region5: #{bottleneck_forward.1} parent=1 // loop_body
      %s22 = ssub.s32 %s17, 1
      %s23 = ssub.s32 %s17, 2
      %s24 = sadd.s32 %s17, 1
      %s25 = ssub.s32 %s17, %s24
      %p26 = scmp.eq.s32.totalorder %s25, 0
      %s28 = sadd.s32 %s27, 1
      %s29 = scalar_select %p26, %s27, %s28
      %p32 = pneg %p26
      %p33 = scmp.eq.s32.totalorder %s17, 1
      %p34 = por %p32, %p33
      %p35 = scmp.ne.s32.totalorder %s27, %s30
      %p36 = scmp.eq.s32.totalorder %s17, 0
      %p37 = por %p35, %p36
      %p38 = scmp.ne.s32.totalorder %s27, %s30
      %p39 = scmp.eq.s32.totalorder %s22, 1
      %p40 = por %p38, %p39
      %p41 = scmp.ne.s32.totalorder %s30, %s31
      %p42 = scmp.eq.s32.totalorder %s22, 0
      %p43 = por %p41, %p42
      %p44 = scmp.ne.s32.totalorder %s30, %s31
      %p45 = scmp.eq.s32.totalorder %s23, 1
      %p46 = por %p44, %p45
      %p48 = scmp.ne.s32.totalorder %s31, %s47
      %p49 = scmp.eq.s32.totalorder %s23, 0
      %p50 = por %p48, %p49
      %s52 = sadd.s32 %s51, 1
      %p55 = scmp.eq.s32.totalorder %s17, 1
      %p56 = scmp.ne.s32.totalorder %s51, %s53
      %p57 = scmp.eq.s32.totalorder %s17, 0
      %p58 = por %p56, %p57
      %p59 = scmp.ne.s32.totalorder %s51, %s53
      %p60 = scmp.eq.s32.totalorder %s22, 1
      %p61 = por %p59, %p60
      %p62 = scmp.ne.s32.totalorder %s53, %s54
      %p63 = scmp.eq.s32.totalorder %s22, 0
      %p64 = por %p62, %p63
      %p65 = scmp.ne.s32.totalorder %s53, %s54
      %p66 = scmp.eq.s32.totalorder %s23, 1
      %p67 = por %p65, %p66
      %p69 = scmp.ne.s32.totalorder %s54, %s68
      %p70 = scmp.eq.s32.totalorder %s23, 0
      %p71 = por %p69, %p70
      %s73 = sadd.s32 %s72, 1
      %p76 = scmp.eq.s32.totalorder %s17, 1
      %p77 = scmp.ne.s32.totalorder %s72, %s74
      %p78 = scmp.eq.s32.totalorder %s17, 0
      %p79 = por %p77, %p78
      %p80 = scmp.ne.s32.totalorder %s72, %s74
      %p81 = scmp.eq.s32.totalorder %s22, 1
      %p82 = por %p80, %p81
      %p83 = scmp.ne.s32.totalorder %s74, %s75
      %p84 = scmp.eq.s32.totalorder %s22, 0
      %p85 = por %p83, %p84
      %p86 = scmp.ne.s32.totalorder %s74, %s75
      %p87 = scmp.eq.s32.totalorder %s23, 1
      %p88 = por %p86, %p87
      %p90 = scmp.ne.s32.totalorder %s75, %s89
      %p91 = scmp.eq.s32.totalorder %s23, 0
      %p92 = por %p90, %p91
      %s94 = sadd.s32 %s93, 1
      %p97 = scmp.eq.s32.totalorder %s17, 1
      %p98 = scmp.ne.s32.totalorder %s93, %s95
      %p99 = scmp.eq.s32.totalorder %s17, 0
      %p100 = por %p98, %p99
      %p101 = scmp.ne.s32.totalorder %s93, %s95
      %p102 = scmp.eq.s32.totalorder %s22, 1
      %p103 = por %p101, %p102
      %p104 = scmp.ne.s32.totalorder %s95, %s96
      %p105 = scmp.eq.s32.totalorder %s22, 0
      %p106 = por %p104, %p105
      %p107 = scmp.ne.s32.totalorder %s95, %s96
      %p108 = scmp.eq.s32.totalorder %s23, 1
      %p109 = por %p107, %p108
      %p111 = scmp.ne.s32.totalorder %s96, %s110
      %p112 = scmp.eq.s32.totalorder %s23, 0
      %p113 = por %p111, %p112
      %s115 = sadd.s32 %s114, 1
      %p118 = scmp.eq.s32.totalorder %s17, 1
      %p119 = scmp.ne.s32.totalorder %s114, %s116
      %p120 = scmp.eq.s32.totalorder %s17, 0
      %p121 = por %p119, %p120
      %p122 = scmp.ne.s32.totalorder %s114, %s116
      %p123 = scmp.eq.s32.totalorder %s22, 1
      %p124 = por %p122, %p123
      %p125 = scmp.ne.s32.totalorder %s116, %s117
      %p126 = scmp.eq.s32.totalorder %s22, 0
      %p127 = por %p125, %p126
      %p128 = scmp.ne.s32.totalorder %s116, %s117
      %p129 = scmp.eq.s32.totalorder %s23, 1
      %p130 = por %p128, %p129
      %p132 = scmp.ne.s32.totalorder %s117, %s131
      %p133 = scmp.eq.s32.totalorder %s23, 0
      %p134 = por %p132, %p133
      %s136 = sadd.s32 %s135, 1
      %p139 = scmp.eq.s32.totalorder %s17, 1
      %p140 = scmp.ne.s32.totalorder %s135, %s137
      %p141 = scmp.eq.s32.totalorder %s17, 0
      %p142 = por %p140, %p141
      %p143 = scmp.ne.s32.totalorder %s135, %s137
      %p144 = scmp.eq.s32.totalorder %s22, 1
      %p145 = por %p143, %p144
      %p146 = scmp.ne.s32.totalorder %s137, %s138
      %p147 = scmp.eq.s32.totalorder %s22, 0
      %p148 = por %p146, %p147
      %p149 = scmp.ne.s32.totalorder %s137, %s138
      %p150 = scmp.eq.s32.totalorder %s23, 1
      %p151 = por %p149, %p150
      %p153 = scmp.ne.s32.totalorder %s138, %s152
      %p154 = scmp.eq.s32.totalorder %s23, 0
      %p155 = por %p153, %p154
      %s157 = sadd.s32 %s156, 1
      %p160 = scmp.eq.s32.totalorder %s17, 1
      %p161 = scmp.ne.s32.totalorder %s156, %s158
      %p162 = scmp.eq.s32.totalorder %s17, 0
      %p163 = por %p161, %p162
      %p164 = scmp.ne.s32.totalorder %s156, %s158
      %p165 = scmp.eq.s32.totalorder %s22, 1
      %p166 = por %p164, %p165
      %p167 = scmp.ne.s32.totalorder %s158, %s159
      %p168 = scmp.eq.s32.totalorder %s22, 0
      %p169 = por %p167, %p168
      %p170 = scmp.ne.s32.totalorder %s158, %s159
      %p171 = scmp.eq.s32.totalorder %s23, 1
      %p172 = por %p170, %p171
      %p174 = scmp.ne.s32.totalorder %s159, %s173
      %p175 = scmp.eq.s32.totalorder %s23, 0
      %p176 = por %p174, %p175
      %s178 = sadd.s32 %s177, 1
      %p181 = scmp.eq.s32.totalorder %s17, 1
      %p182 = scmp.ne.s32.totalorder %s177, %s179
      %p183 = scmp.eq.s32.totalorder %s17, 0
      %p184 = por %p182, %p183
      %p185 = scmp.ne.s32.totalorder %s177, %s179
      %p186 = scmp.eq.s32.totalorder %s22, 1
      %p187 = por %p185, %p186
      %p188 = scmp.ne.s32.totalorder %s179, %s180
      %p189 = scmp.eq.s32.totalorder %s22, 0
      %p190 = por %p188, %p189
      %p191 = scmp.ne.s32.totalorder %s179, %s180
      %p192 = scmp.eq.s32.totalorder %s23, 1
      %p193 = por %p191, %p192
      %p195 = scmp.ne.s32.totalorder %s180, %s194
      %p196 = scmp.eq.s32.totalorder %s23, 0
      %p197 = por %p195, %p196
      %s198 = ssub.s32 %s17, %s24
      %p199 = scmp.eq.s32.totalorder %s198, 0
      %s201 = sadd.s32 %s200, 1
      %s202 = scalar_select %p199, %s200, %s201
      %p205 = pneg %p199
      %p206 = scmp.eq.s32.totalorder %s17, 1
      %p207 = por %p205, %p206
      %p208 = scmp.ne.s32.totalorder %s200, %s203
      %p209 = scmp.eq.s32.totalorder %s17, 0
      %p210 = por %p208, %p209
      %p211 = scmp.ne.s32.totalorder %s200, %s203
      %p212 = scmp.eq.s32.totalorder %s22, 1
      %p213 = por %p211, %p212
      %p214 = scmp.ne.s32.totalorder %s203, %s204
      %p215 = scmp.eq.s32.totalorder %s22, 0
      %p216 = por %p214, %p215
      %p217 = scmp.ne.s32.totalorder %s203, %s204
      %p218 = scmp.eq.s32.totalorder %s23, 1
      %p219 = por %p217, %p218
      %p221 = scmp.ne.s32.totalorder %s204, %s220
      %p222 = scmp.eq.s32.totalorder %s23, 0
      %p223 = por %p221, %p222
      %p224 = scmp.le.s32.totalorder 1, %s17
      %p225 = scmp.lt.s32.totalorder %s17, 3
      %p226 = pnand %p224, %p225
      %p227 = pneg %p226
      // Predicated region
      $region9: #{bottleneck_forward.1} parent=5 // pred_check
        _
      $region10: #{bottleneck_forward.1} parent=5 // pred_check_branch
        %229 = sbr.rel (%p226) target = $region12
      $region11: #{bottleneck_forward.1} parent=5 // pred_region
        %s230 = ssub.s32 %s17, 1
        // Predicated region
        $region13: #{bottleneck_forward.1} parent=11 // pred_check
          %p231 = pneg %p64
        $region14: #{bottleneck_forward.1} parent=11 // pred_check_branch
          %233 = sbr.rel (%p231) target = $region16
        $region15: #{bottleneck_forward.1} parent=11 // pred_region
          _
        $region16: #{bottleneck_forward.1} parent=11 // pred_fallthru
          _
        // Predicated region
        $region17: #{bottleneck_forward.1} parent=11 // pred_check
          %p234 = pneg %p85
        $region18: #{bottleneck_forward.1} parent=11 // pred_check_branch
          %236 = sbr.rel (%p234) target = $region20
        $region19: #{bottleneck_forward.1} parent=11 // pred_region
          _
        $region20: #{bottleneck_forward.1} parent=11 // pred_fallthru
          _
        // Predicated region
        $region21: #{bottleneck_forward.1} parent=11 // pred_check
          %p237 = pneg %p106
        $region22: #{bottleneck_forward.1} parent=11 // pred_check_branch
          %239 = sbr.rel (%p237) target = $region24
        $region23: #{bottleneck_forward.1} parent=11 // pred_region
          _
        $region24: #{bottleneck_forward.1} parent=11 // pred_fallthru
          _
        // Predicated region
        $region25: #{bottleneck_forward.1} parent=11 // pred_check
          %p240 = pneg %p127
        $region26: #{bottleneck_forward.1} parent=11 // pred_check_branch
          %242 = sbr.rel (%p240) target = $region28
        $region27: #{bottleneck_forward.1} parent=11 // pred_region
          _
        $region28: #{bottleneck_forward.1} parent=11 // pred_fallthru
          _
        // Predicated region
        $region29: #{bottleneck_forward.1} parent=11 // pred_check
          %p243 = pneg %p148
        $region30: #{bottleneck_forward.1} parent=11 // pred_check_branch
          %245 = sbr.rel (%p243) target = $region32
        $region31: #{bottleneck_forward.1} parent=11 // pred_region
          _
        $region32: #{bottleneck_forward.1} parent=11 // pred_fallthru
          _
        // Predicated region
        $region33: #{bottleneck_forward.1} parent=11 // pred_check
          %p246 = pneg %p169
        $region34: #{bottleneck_forward.1} parent=11 // pred_check_branch
          %248 = sbr.rel (%p246) target = $region36
        $region35: #{bottleneck_forward.1} parent=11 // pred_region
          _
        $region36: #{bottleneck_forward.1} parent=11 // pred_fallthru
          _
        // Predicated region
        $region37: #{bottleneck_forward.1} parent=11 // pred_check
          %p249 = pneg %p190
        $region38: #{bottleneck_forward.1} parent=11 // pred_check_branch
          %251 = sbr.rel (%p249) target = $region40
        $region39: #{bottleneck_forward.1} parent=11 // pred_region
          _
        $region40: #{bottleneck_forward.1} parent=11 // pred_fallthru
          _
      $region12: #{bottleneck_forward.1} parent=5 // pred_fallthru
        _
      %p252 = scmp.lt.s32.totalorder %s17, 2
      // Predicated region
      $region41: #{bottleneck_forward.1} parent=5 // pred_check
        %p253 = pneg %p252
      $region42: #{bottleneck_forward.1} parent=5 // pred_check_branch
        %255 = sbr.rel (%p253) target = $region44
      $region43: #{bottleneck_forward.1} parent=5 // pred_region
        // Predicated region
        $region45: #{bottleneck_forward.1} parent=43 // pred_check
          %p256 = pneg %p37
        $region46: #{bottleneck_forward.1} parent=43 // pred_check_branch
          %258 = sbr.rel (%p256) target = $region48
        $region47: #{bottleneck_forward.1} parent=43 // pred_region
          %s259 = smul.u32 8, %s17
          %p260 = scmp.lt.s32.totalorder %s259, 15
          %s261 = scalar_select %p260, %s259, 15
          %s262 = smul.addr %s261, 8
          %s263 = scalar_lea.vmem %s0, %s262
          %s264 = smul.u32 8, %s17
        $region48: #{bottleneck_forward.1} parent=43 // pred_fallthru
          _
      $region44: #{bottleneck_forward.1} parent=5 // pred_fallthru
        _
      %p265 = scmp.le.s32.totalorder 1, %s17
      %p266 = scmp.lt.s32.totalorder %s17, 3
      %p267 = pnand %p265, %p266
      %p268 = pneg %p267
      // Predicated region
      $region49: #{bottleneck_forward.1} parent=5 // pred_check
        _
      $region50: #{bottleneck_forward.1} parent=5 // pred_check_branch
        %270 = sbr.rel (%p267) target = $region52
      $region51: #{bottleneck_forward.1} parent=5 // pred_region
        %s271 = ssub.s32 %s17, 1
        %s272 = smul.u32 8, %s22
        %p273 = scmp.lt.s32.totalorder %s272, 15
        %s274 = scalar_select %p273, %s272, 15
        %s275 = smul.addr %s274, 8
        %s276 = scalar_lea.vmem %s0, %s275
        %p277 = pneg %p43
        %p278 = pneg %p40
        %p279 = pneg %p64
        %p280 = pneg %p61
        %p281 = pneg %p85
        %p282 = pneg %p82
        %p283 = pneg %p106
        %p284 = pneg %p103
        %p285 = pneg %p127
        %p286 = pneg %p124
        %p287 = pneg %p148
        %p288 = pneg %p145
        %p289 = pneg %p169
        %p290 = pneg %p166
        %p291 = pneg %p190
        %p292 = pneg %p187
        %p293 = pneg %p216
        %p294 = pneg %p213
        %s295 = sand.u32 %s203, 1
        %s296 = scalar_lea.sflag [#allocation4], %s295
        %s297 = sand.u32 %s203, 1
        %s298 = smul.addr %s297, 64
        %s299 = scalar_lea.vmem [#allocation3], %s298
        %s300 = smul.u32 8, %s22
        %p301 = scmp.lt.s32.totalorder %s300, 15
        %s302 = scalar_select %p301, %s300, 15
        %s303 = smul.addr %s302, 8
        %s304 = scalar_lea.vmem %s0, %s303
        %s305 = smul.u32 8, %s22
        %s306 = smul.u32 8, %s22
        %v307 = vld [vmem:[%s304] sm:$0xff]
        %v308 = vld [vmem:[%s304 + $0x8] sm:$0xff]
        %v309 = vld [vmem:[%s304 + $0x10] sm:$0xff]
        %v310 = vld [vmem:[%s304 + $0x18] sm:$0xff]
        %v311 = vld [vmem:[%s304 + $0x20] sm:$0xff]
        %v312 = vld [vmem:[%s304 + $0x28] sm:$0xff]
        %v313 = vld [vmem:[%s304 + $0x30] sm:$0xff]
        %v314 = vld [vmem:[%s304 + $0x38] sm:$0xff]
        %v315 = vld [vmem:[%s1] sm:$0xff]
        %v316 = vld [vmem:[%s1 + $0x8] sm:$0xff]
        %v317 = vld [vmem:[%s1 + $0x10] sm:$0xff]
        %v318 = vld [vmem:[%s1 + $0x18] sm:$0xff]
        %v319 = vld [vmem:[%s1 + $0x20] sm:$0xff]
        %v320 = vld [vmem:[%s1 + $0x28] sm:$0xff]
        %v321 = vld [vmem:[%s1 + $0x30] sm:$0xff]
        %v322 = vld [vmem:[%s1 + $0x38] sm:$0xff]
        %v323 = vld [vmem:[%s1 + $0x40] sm:$0xff]
        %v324 = vld [vmem:[%s1 + $0x48] sm:$0xff]
        %v325 = vld [vmem:[%s1 + $0x50] sm:$0xff]
        %v326 = vld [vmem:[%s1 + $0x58] sm:$0xff]
        %v327 = vld [vmem:[%s1 + $0x60] sm:$0xff]
        %v328 = vld [vmem:[%s1 + $0x68] sm:$0xff]
        %v329 = vld [vmem:[%s1 + $0x70] sm:$0xff]
        %v330 = vld [vmem:[%s1 + $0x78] sm:$0xff]
        %v331 = vld [vmem:[%s1 + $0x80] sm:$0xff]
        %v332 = vld [vmem:[%s1 + $0x88] sm:$0xff]
        %v333 = vld [vmem:[%s1 + $0x90] sm:$0xff]
        %v334 = vld [vmem:[%s1 + $0x98] sm:$0xff]
        %v335 = vld [vmem:[%s1 + $0xa0] sm:$0xff]
        %v336 = vld [vmem:[%s1 + $0xa8] sm:$0xff]
        %v337 = vld [vmem:[%s1 + $0xb0] sm:$0xff]
        %v338 = vld [vmem:[%s1 + $0xb8] sm:$0xff]
        %v339 = vld [vmem:[%s1 + $0xc0] sm:$0xff]
        %v340 = vld [vmem:[%s1 + $0xc8] sm:$0xff]
        %v341 = vld [vmem:[%s1 + $0xd0] sm:$0xff]
        %v342 = vld [vmem:[%s1 + $0xd8] sm:$0xff]
        %v343 = vld [vmem:[%s1 + $0xe0] sm:$0xff]
        %v344 = vld [vmem:[%s1 + $0xe8] sm:$0xff]
        %v345 = vld [vmem:[%s1 + $0xf0] sm:$0xff]
        %v346 = vld [vmem:[%s1 + $0xf8] sm:$0xff]
        %347 = vmatprep.subr.mxu0 %v316
        %348 = vmatpush1.msra.mxu0 %v315
        %349 = vmatprep.subr.mxu0 %v318
        %350 = vmatpush1.msra.mxu0 %v317
        %351 = vmatprep.subr.mxu0 %v320
        %352 = vmatpush1.msra.mxu0 %v319
        %353 = vmatprep.subr.mxu0 %v322
        %354 = vmatpush1.msra.mxu0 %v321
        %355 = vmatprep.subr.mxu0 %v324
        %356 = vmatpush1.msra.mxu0 %v323
        %357 = vmatprep.subr.mxu0 %v326
        %358 = vmatpush1.msra.mxu0 %v325
        %359 = vmatprep.subr.mxu0 %v328
        %360 = vmatpush1.msra.mxu0 %v327
        %361 = vmatprep.subr.mxu0 %v330
        %362 = vmatpush1.msra.mxu0 %v329
        %363 = vmatprep.subr.mxu0 %v332
        %364 = vmatpush1.msra.mxu0 %v331
        %365 = vmatprep.subr.mxu0 %v334
        %366 = vmatpush1.msra.mxu0 %v333
        %367 = vmatprep.subr.mxu0 %v336
        %368 = vmatpush1.msra.mxu0 %v335
        %369 = vmatprep.subr.mxu0 %v338
        %370 = vmatpush1.msra.mxu0 %v337
        %371 = vmatprep.subr.mxu0 %v340
        %372 = vmatpush1.msra.mxu0 %v339
        %373 = vmatprep.subr.mxu0 %v342
        %374 = vmatpush1.msra.mxu0 %v341
        %375 = vmatprep.subr.mxu0 %v344
        %376 = vmatpush1.msra.mxu0 %v343
        %377 = vmatprep.subr.mxu0 %v346
        %378 = vmatpush1.msra.mxu0 %v345
        %379 = vmatprep.subr.mxu0 0.0
        %380 = vmatpush1.msra.mxu0 0.0
        %381 = vmatprep.subr.mxu0 0.0
        %382 = vmatpush1.msra.mxu0 0.0
        %383 = vmatprep.subr.mxu0 0.0
        %384 = vmatpush1.msra.mxu0 0.0
        %385 = vmatprep.subr.mxu0 0.0
        %386 = vmatpush1.msra.mxu0 0.0
        %387 = vmatprep.subr.mxu0 0.0
        %388 = vmatpush1.msra.mxu0 0.0
        %389 = vmatprep.subr.mxu0 0.0
        %390 = vmatpush1.msra.mxu0 0.0
        %391 = vmatprep.subr.mxu0 0.0
        %392 = vmatpush1.msra.mxu0 0.0
        %393 = vmatprep.subr.mxu0 0.0
        %394 = vmatpush1.msra.mxu0 0.0
        %395 = vmatprep.subr.mxu0 0.0
        %396 = vmatpush1.msra.mxu0 0.0
        %397 = vmatprep.subr.mxu0 0.0
        %398 = vmatpush1.msra.mxu0 0.0
        %399 = vmatprep.subr.mxu0 0.0
        %400 = vmatpush1.msra.mxu0 0.0
        %401 = vmatprep.subr.mxu0 0.0
        %402 = vmatpush1.msra.mxu0 0.0
        %403 = vmatprep.subr.mxu0 0.0
        %404 = vmatpush1.msra.mxu0 0.0
        %405 = vmatprep.subr.mxu0 0.0
        %406 = vmatpush1.msra.mxu0 0.0
        %407 = vmatprep.subr.mxu0 0.0
        %408 = vmatpush1.msra.mxu0 0.0
        %409 = vmatprep.subr.mxu0 0.0
        %410 = vmatpush1.msra.mxu0 0.0
        %411 = vmatprep.mubr.f32.mxu0 0.0
        %412 = vmatmul.mubr.f32.gmra.mrb[0].mxu0 %v307
        %v413 = vpop.f32.mrb[0].mxu0
        %v414 = vadd.f32 0.0, %v413
        %v415 = vpop.f32.mrb[0].mxu0
        %v416 = vadd.f32 0.0, %v415
        %417 = vmatprep.mubr.f32.mxu0 0.0
        %418 = vmatmul.mubr.f32.gmra.mrb[0].mxu0 %v308
        %v419 = vpop.f32.mrb[0].mxu0
        %v420 = vadd.f32 0.0, %v419
        %v421 = vpop.f32.mrb[0].mxu0
        %v422 = vadd.f32 0.0, %v421
        %423 = vmatprep.mubr.f32.mxu0 0.0
        %424 = vmatmul.mubr.f32.gmra.mrb[0].mxu0 %v309
        %v425 = vpop.f32.mrb[0].mxu0
        %v426 = vadd.f32 0.0, %v425
        %v427 = vpop.f32.mrb[0].mxu0
        %v428 = vadd.f32 0.0, %v427
        %429 = vmatprep.mubr.f32.mxu0 0.0
        %430 = vmatmul.mubr.f32.gmra.mrb[0].mxu0 %v310
        %v431 = vpop.f32.mrb[0].mxu0
        %v432 = vadd.f32 0.0, %v431
        %v433 = vpop.f32.mrb[0].mxu0
        %v434 = vadd.f32 0.0, %v433
        %435 = vmatprep.mubr.f32.mxu0 0.0
        %436 = vmatmul.mubr.f32.gmra.mrb[0].mxu0 %v311
        %v437 = vpop.f32.mrb[0].mxu0
        %v438 = vadd.f32 0.0, %v437
        %v439 = vpop.f32.mrb[0].mxu0
        %v440 = vadd.f32 0.0, %v439
        %441 = vmatprep.mubr.f32.mxu0 0.0
        %442 = vmatmul.mubr.f32.gmra.mrb[0].mxu0 %v312
        %v443 = vpop.f32.mrb[0].mxu0
        %v444 = vadd.f32 0.0, %v443
        %v445 = vpop.f32.mrb[0].mxu0
        %v446 = vadd.f32 0.0, %v445
        %447 = vmatprep.mubr.f32.mxu0 0.0
        %448 = vmatmul.mubr.f32.gmra.mrb[0].mxu0 %v313
        %v449 = vpop.f32.mrb[0].mxu0
        %v450 = vadd.f32 0.0, %v449
        %v451 = vpop.f32.mrb[0].mxu0
        %v452 = vadd.f32 0.0, %v451
        %453 = vmatprep.mubr.f32.mxu0 0.0
        %454 = vmatmul.mubr.f32.gmra.mrb[0].mxu0 %v314
        %v455 = vpop.f32.mrb[0].mxu0
        %v456 = vadd.f32 0.0, %v455
        %v457 = vpop.f32.mrb[0].mxu0
        %v458 = vadd.f32 0.0, %v457
        %459 = vdwg.mxu0
        %v460 = vld [vmem:[%s2] sm:$0x1]
        %v462 = vlaneseq
        %v463 = vshrl.u32 %v462, 7
        %v464 = vsub.s32 0, %v463
        %v465 = vrot.slane %v460, %v464
        %v467 = vadd.f32 %v414, %v465
        %v468 = vadd.f32 %v420, %v465
        %v469 = vadd.f32 %v426, %v465
        %v470 = vadd.f32 %v432, %v465
        %v471 = vadd.f32 %v438, %v465
        %v472 = vadd.f32 %v444, %v465
        %v473 = vadd.f32 %v450, %v465
        %v474 = vadd.f32 %v456, %v465
        %v475 = vmax.f32 %v467, 0.0
        %v476 = vmax.f32 %v468, 0.0
        %v477 = vmax.f32 %v469, 0.0
        %v478 = vmax.f32 %v470, 0.0
        %v479 = vmax.f32 %v471, 0.0
        %v480 = vmax.f32 %v472, 0.0
        %v481 = vmax.f32 %v473, 0.0
        %v482 = vmax.f32 %v474, 0.0
        %v483 = vld [vmem:[%s3] sm:$0x1]
        %v485 = vlaneseq
        %v486 = vshrl.u32 %v485, 7
        %v487 = vsub.s32 0, %v486
        %v488 = vrot.slane %v483, %v487
        %v490 = vadd.f32 %v416, %v488
        %v491 = vadd.f32 %v422, %v488
        %v492 = vadd.f32 %v428, %v488
        %v493 = vadd.f32 %v434, %v488
        %v494 = vadd.f32 %v440, %v488
        %v495 = vadd.f32 %v446, %v488
        %v496 = vadd.f32 %v452, %v488
        %v497 = vadd.f32 %v458, %v488
        %498 = vst [vmem:[%s299] sm:$0xff] %v490
        %499 = vst [vmem:[%s299 + $0x8] sm:$0xff] %v491
        %500 = vst [vmem:[%s299 + $0x10] sm:$0xff] %v492
        %501 = vst [vmem:[%s299 + $0x18] sm:$0xff] %v493
        %502 = vst [vmem:[%s299 + $0x20] sm:$0xff] %v494
        %503 = vst [vmem:[%s299 + $0x28] sm:$0xff] %v495
        %504 = vst [vmem:[%s299 + $0x30] sm:$0xff] %v496
        %505 = vst [vmem:[%s299 + $0x38] sm:$0xff] %v497
        %506 = vst [vmem:[#allocation2] sm:$0xff] 0.0
        %507 = vst [vmem:[#allocation2 + $0x8] sm:$0xff] 0.0
        %s508 = scalar_lea.vmem [#allocation2], 144
        %509 = vst [vmem:[%s508] sm:$0xff] 0.0
        %510 = vst [vmem:[%s508 + $0x8] sm:$0xff] 0.0
        %511 = vst [vmem:[#allocation2] sm:$0x1] 0.0
        %512 = vst [vmem:[#allocation2 + $0x10] sm:$0x1] 0.0
        %513 = vst [vmem:[#allocation2 + $0x20] sm:$0x1] 0.0
        %514 = vst [vmem:[#allocation2 + $0x30] sm:$0x1] 0.0
        %515 = vst [vmem:[#allocation2 + $0x40] sm:$0x1] 0.0
        %516 = vst [vmem:[#allocation2 + $0x50] sm:$0x1] 0.0
        %517 = vst [vmem:[#allocation2 + $0x60] sm:$0x1] 0.0
        %518 = vst [vmem:[#allocation2 + $0x70] sm:$0x1] 0.0
        %519 = vst [vmem:[#allocation2 + $0x80] sm:$0x1] 0.0
        %520 = vst [vmem:[#allocation2 + $0x90] sm:$0x1] 0.0
        %521 = vst [vmem:[#allocation2 + $0x9] sm:$0x7f] 0.0
        %522 = vst [vmem:[#allocation2 + $0x19] sm:$0x7f] 0.0
        %523 = vst [vmem:[#allocation2 + $0x29] sm:$0x7f] 0.0
        %524 = vst [vmem:[#allocation2 + $0x39] sm:$0x7f] 0.0
        %525 = vst [vmem:[#allocation2 + $0x49] sm:$0x7f] 0.0
        %526 = vst [vmem:[#allocation2 + $0x59] sm:$0x7f] 0.0
        %527 = vst [vmem:[#allocation2 + $0x69] sm:$0x7f] 0.0
        %528 = vst [vmem:[#allocation2 + $0x79] sm:$0x7f] 0.0
        %529 = vst [vmem:[#allocation2 + $0x89] sm:$0x7f] 0.0
        %530 = vst [vmem:[#allocation2 + $0x99] sm:$0x7f] 0.0
        %s531 = scalar_lea.vmem [#allocation2], 16
        %532 = vst [vmem:[%s531 + $0x1] sm:$0xff] %v475
        %533 = vst [vmem:[%s531 + $0x11] sm:$0xff] %v476
        %534 = vst [vmem:[%s531 + $0x21] sm:$0xff] %v477
        %535 = vst [vmem:[%s531 + $0x31] sm:$0xff] %v478
        %536 = vst [vmem:[%s531 + $0x41] sm:$0xff] %v479
        %537 = vst [vmem:[%s531 + $0x51] sm:$0xff] %v480
        %538 = vst [vmem:[%s531 + $0x61] sm:$0xff] %v481
        %539 = vst [vmem:[%s531 + $0x71] sm:$0xff] %v482
        %v540 = vld [vmem:[#allocation2] sm:$0xff]
        %v541 = vld [vmem:[#allocation2 + $0x8] sm:$0xff]
        %v542 = vld [vmem:[#allocation2 + $0x10] sm:$0xff]
        %v543 = vld [vmem:[#allocation2 + $0x18] sm:$0xff]
        %v544 = vld [vmem:[#allocation2 + $0x20] sm:$0xff]
        %v545 = vld [vmem:[#allocation2 + $0x28] sm:$0xff]
        %v546 = vld [vmem:[#allocation2 + $0x30] sm:$0xff]
        %v547 = vld [vmem:[#allocation2 + $0x38] sm:$0xff]
        %v548 = vld [vmem:[#allocation2 + $0x40] sm:$0xff]
        %v549 = vld [vmem:[#allocation2 + $0x48] sm:$0xff]
        %v550 = vld [vmem:[#allocation2 + $0x50] sm:$0xff]
        %v551 = vld [vmem:[#allocation2 + $0x58] sm:$0xff]
        %v552 = vld [vmem:[#allocation2 + $0x60] sm:$0xff]
        %v553 = vld [vmem:[#allocation2 + $0x68] sm:$0xff]
        %v554 = vld [vmem:[#allocation2 + $0x70] sm:$0xff]
        %v555 = vld [vmem:[#allocation2 + $0x78] sm:$0xff]
        %v556 = vld [vmem:[%s4] sm:$0xff]
        %v557 = vld [vmem:[%s4 + $0x8] sm:$0xff]
        %v558 = vld [vmem:[%s4 + $0x10] sm:$0xff]
        %v559 = vld [vmem:[%s4 + $0x18] sm:$0xff]
        %v560 = vld [vmem:[%s4 + $0x20] sm:$0xff]
        %v561 = vld [vmem:[%s4 + $0x28] sm:$0xff]
        %v562 = vld [vmem:[%s4 + $0x30] sm:$0xff]
        %v563 = vld [vmem:[%s4 + $0x38] sm:$0xff]
        %v564 = vld [vmem:[%s4 + $0x40] sm:$0xff]
        %v565 = vld [vmem:[%s4 + $0x48] sm:$0xff]
        %v566 = vld [vmem:[%s4 + $0x50] sm:$0xff]
        %v567 = vld [vmem:[%s4 + $0x58] sm:$0xff]
        %v568 = vld [vmem:[%s4 + $0x60] sm:$0xff]
        %v569 = vld [vmem:[%s4 + $0x68] sm:$0xff]
        %v570 = vld [vmem:[%s4 + $0x70] sm:$0xff]
        %v571 = vld [vmem:[%s4 + $0x78] sm:$0xff]
        %s572 = scalar_lea.vmem %s4, 128
        %v573 = vld [vmem:[%s572] sm:$0xff]
        %v574 = vld [vmem:[%s572 + $0x8] sm:$0xff]
        %v575 = vld [vmem:[%s572 + $0x10] sm:$0xff]
        %v576 = vld [vmem:[%s572 + $0x18] sm:$0xff]
        %v577 = vld [vmem:[%s572 + $0x20] sm:$0xff]
        %v578 = vld [vmem:[%s572 + $0x28] sm:$0xff]
        %v579 = vld [vmem:[%s572 + $0x30] sm:$0xff]
        %v580 = vld [vmem:[%s572 + $0x38] sm:$0xff]
        %v581 = vld [vmem:[%s572 + $0x40] sm:$0xff]
        %v582 = vld [vmem:[%s572 + $0x48] sm:$0xff]
        %v583 = vld [vmem:[%s572 + $0x50] sm:$0xff]
        %v584 = vld [vmem:[%s572 + $0x58] sm:$0xff]
        %v585 = vld [vmem:[%s572 + $0x60] sm:$0xff]
        %v586 = vld [vmem:[%s572 + $0x68] sm:$0xff]
        %v587 = vld [vmem:[%s572 + $0x70] sm:$0xff]
        %v588 = vld [vmem:[%s572 + $0x78] sm:$0xff]
        %s589 = scalar_lea.vmem %s4, 256
        %v590 = vld [vmem:[%s589] sm:$0xff]
        %v591 = vld [vmem:[%s589 + $0x8] sm:$0xff]
        %v592 = vld [vmem:[%s589 + $0x10] sm:$0xff]
        %v593 = vld [vmem:[%s589 + $0x18] sm:$0xff]
        %v594 = vld [vmem:[%s589 + $0x20] sm:$0xff]
        %v595 = vld [vmem:[%s589 + $0x28] sm:$0xff]
        %v596 = vld [vmem:[%s589 + $0x30] sm:$0xff]
        %v597 = vld [vmem:[%s589 + $0x38] sm:$0xff]
        %v598 = vld [vmem:[%s589 + $0x40] sm:$0xff]
        %v599 = vld [vmem:[%s589 + $0x48] sm:$0xff]
        %v600 = vld [vmem:[%s589 + $0x50] sm:$0xff]
        %v601 = vld [vmem:[%s589 + $0x58] sm:$0xff]
        %v602 = vld [vmem:[%s589 + $0x60] sm:$0xff]
        %v603 = vld [vmem:[%s589 + $0x68] sm:$0xff]
        %v604 = vld [vmem:[%s589 + $0x70] sm:$0xff]
        %v605 = vld [vmem:[%s589 + $0x78] sm:$0xff]
        %v606 = vld [vmem:[%s531] sm:$0xff]
        %v607 = vld [vmem:[%s531 + $0x8] sm:$0xff]
        %v608 = vld [vmem:[%s531 + $0x10] sm:$0xff]
        %v609 = vld [vmem:[%s531 + $0x18] sm:$0xff]
        %v610 = vld [vmem:[%s531 + $0x20] sm:$0xff]
        %v611 = vld [vmem:[%s531 + $0x28] sm:$0xff]
        %v612 = vld [vmem:[%s531 + $0x30] sm:$0xff]
        %v613 = vld [vmem:[%s531 + $0x38] sm:$0xff]
        %v614 = vld [vmem:[%s531 + $0x40] sm:$0xff]
        %v615 = vld [vmem:[%s531 + $0x48] sm:$0xff]
        %v616 = vld [vmem:[%s531 + $0x50] sm:$0xff]
        %v617 = vld [vmem:[%s531 + $0x58] sm:$0xff]
        %v618 = vld [vmem:[%s531 + $0x60] sm:$0xff]
        %v619 = vld [vmem:[%s531 + $0x68] sm:$0xff]
        %v620 = vld [vmem:[%s531 + $0x70] sm:$0xff]
        %v621 = vld [vmem:[%s531 + $0x78] sm:$0xff]
        %s622 = scalar_lea.vmem %s4, 384
        %v623 = vld [vmem:[%s622] sm:$0xff]
        %v624 = vld [vmem:[%s622 + $0x8] sm:$0xff]
        %v625 = vld [vmem:[%s622 + $0x10] sm:$0xff]
        %v626 = vld [vmem:[%s622 + $0x18] sm:$0xff]
        %v627 = vld [vmem:[%s622 + $0x20] sm:$0xff]
        %v628 = vld [vmem:[%s622 + $0x28] sm:$0xff]
        %v629 = vld [vmem:[%s622 + $0x30] sm:$0xff]
        %v630 = vld [vmem:[%s622 + $0x38] sm:$0xff]
        %v631 = vld [vmem:[%s622 + $0x40] sm:$0xff]
        %v632 = vld [vmem:[%s622 + $0x48] sm:$0xff]
        %v633 = vld [vmem:[%s622 + $0x50] sm:$0xff]
        %v634 = vld [vmem:[%s622 + $0x58] sm:$0xff]
        %v635 = vld [vmem:[%s622 + $0x60] sm:$0xff]
        %v636 = vld [vmem:[%s622 + $0x68] sm:$0xff]
        %v637 = vld [vmem:[%s622 + $0x70] sm:$0xff]
        %v638 = vld [vmem:[%s622 + $0x78] sm:$0xff]
        %639 = vmatprep.subr.mxu0 0.0
        %640 = vmatpush1.msra.mxu0 %v623
        %641 = vmatprep.subr.mxu0 0.0
        %642 = vmatpush1.msra.mxu0 %v624
        %643 = vmatprep.subr.mxu0 0.0
        %644 = vmatpush1.msra.mxu0 %v625
        %645 = vmatprep.subr.mxu0 0.0
        %646 = vmatpush1.msra.mxu0 %v626
        %647 = vmatprep.subr.mxu0 0.0
        %648 = vmatpush1.msra.mxu0 %v627
        %649 = vmatprep.subr.mxu0 0.0
        %650 = vmatpush1.msra.mxu0 %v628
        %651 = vmatprep.subr.mxu0 0.0
        %652 = vmatpush1.msra.mxu0 %v629
        %653 = vmatprep.subr.mxu0 0.0
        %654 = vmatpush1.msra.mxu0 %v630
        %655 = vmatprep.subr.mxu0 0.0
        %656 = vmatpush1.msra.mxu0 %v631
        %657 = vmatprep.subr.mxu0 0.0
        %658 = vmatpush1.msra.mxu0 %v632
        %659 = vmatprep.subr.mxu0 0.0
        %660 = vmatpush1.msra.mxu0 %v633
        %661 = vmatprep.subr.mxu0 0.0
        %662 = vmatpush1.msra.mxu0 %v634
        %663 = vmatprep.subr.mxu0 0.0
        %664 = vmatpush1.msra.mxu0 %v635
        %665 = vmatprep.subr.mxu0 0.0
        %666 = vmatpush1.msra.mxu0 %v636
        %667 = vmatprep.subr.mxu0 0.0
        %668 = vmatpush1.msra.mxu0 %v637
        %669 = vmatprep.subr.mxu0 0.0
        %670 = vmatpush1.msra.mxu0 %v638
        %671 = vmatprep.subr.mxu0 0.0
        %672 = vmatpush1.msra.mxu0 0.0
        %673 = vmatprep.subr.mxu0 0.0
        %674 = vmatpush1.msra.mxu0 0.0
        %675 = vmatprep.subr.mxu0 0.0
        %676 = vmatpush1.msra.mxu0 0.0
        %677 = vmatprep.subr.mxu0 0.0
        %678 = vmatpush1.msra.mxu0 0.0
        %679 = vmatprep.subr.mxu0 0.0
        %680 = vmatpush1.msra.mxu0 0.0
        %681 = vmatprep.subr.mxu0 0.0
        %682 = vmatpush1.msra.mxu0 0.0
        %683 = vmatprep.subr.mxu0 0.0
        %684 = vmatpush1.msra.mxu0 0.0
        %685 = vmatprep.subr.mxu0 0.0
        %686 = vmatpush1.msra.mxu0 0.0
        %687 = vmatprep.subr.mxu0 0.0
        %688 = vmatpush1.msra.mxu0 0.0
        %689 = vmatprep.subr.mxu0 0.0
        %690 = vmatpush1.msra.mxu0 0.0
        %691 = vmatprep.subr.mxu0 0.0
        %692 = vmatpush1.msra.mxu0 0.0
        %693 = vmatprep.subr.mxu0 0.0
        %694 = vmatpush1.msra.mxu0 0.0
        %695 = vmatprep.subr.mxu0 0.0
        %696 = vmatpush1.msra.mxu0 0.0
        %697 = vmatprep.subr.mxu0 0.0
        %698 = vmatpush1.msra.mxu0 0.0
        %699 = vmatprep.subr.mxu0 0.0
        %700 = vmatpush1.msra.mxu0 0.0
        %701 = vmatprep.subr.mxu0 0.0
        %702 = vmatpush1.msra.mxu0 0.0
        %703 = vmatprep.mubr.f32.mxu0 0.0
        %704 = vmatmul.mubr.f32.gmra.mrb[0].mxu0 %v606
        %v705 = vpop.f32.mrb[0].mxu0
        %v706 = vadd.f32 0.0, %v705
        %v707 = vpop.f32.mrb[0].mxu0
        %708 = vmatprep.mubr.f32.mxu0 0.0
        %709 = vmatmul.mubr.f32.gmra.mrb[0].mxu0 %v607
        %v710 = vpop.f32.mrb[0].mxu0
        %v711 = vpop.f32.mrb[0].mxu0
        %712 = vmatprep.mubr.f32.mxu0 0.0
        %713 = vmatmul.mubr.f32.gmra.mrb[0].mxu0 %v608
        %v714 = vpop.f32.mrb[0].mxu0
        %v715 = vadd.f32 0.0, %v714
        %v716 = vpop.f32.mrb[0].mxu0
        %717 = vmatprep.mubr.f32.mxu0 0.0
        %718 = vmatmul.mubr.f32.gmra.mrb[0].mxu0 %v609
        %v719 = vpop.f32.mrb[0].mxu0
        %v720 = vpop.f32.mrb[0].mxu0
        %721 = vmatprep.mubr.f32.mxu0 0.0
        %722 = vmatmul.mubr.f32.gmra.mrb[0].mxu0 %v610
        %v723 = vpop.f32.mrb[0].mxu0
        %v724 = vadd.f32 0.0, %v723
        %v725 = vpop.f32.mrb[0].mxu0
        %726 = vmatprep.mubr.f32.mxu0 0.0
        %727 = vmatmul.mubr.f32.gmra.mrb[0].mxu0 %v611
        %v728 = vpop.f32.mrb[0].mxu0
        %v729 = vpop.f32.mrb[0].mxu0
        %730 = vmatprep.mubr.f32.mxu0 0.0
        %731 = vmatmul.mubr.f32.gmra.mrb[0].mxu0 %v612
        %v732 = vpop.f32.mrb[0].mxu0
        %v733 = vadd.f32 0.0, %v732
        %v734 = vpop.f32.mrb[0].mxu0
        %735 = vmatprep.mubr.f32.mxu0 0.0
        %736 = vmatmul.mubr.f32.gmra.mrb[0].mxu0 %v613
        %v737 = vpop.f32.mrb[0].mxu0
        %v738 = vpop.f32.mrb[0].mxu0
        %739 = vmatprep.mubr.f32.mxu0 0.0
        %740 = vmatmul.mubr.f32.gmra.mrb[0].mxu0 %v614
        %v741 = vpop.f32.mrb[0].mxu0
        %v742 = vadd.f32 0.0, %v741
        %v743 = vpop.f32.mrb[0].mxu0
        %744 = vmatprep.mubr.f32.mxu0 0.0
        %745 = vmatmul.mubr.f32.gmra.mrb[0].mxu0 %v615
        %v746 = vpop.f32.mrb[0].mxu0
        %v747 = vpop.f32.mrb[0].mxu0
        %748 = vmatprep.mubr.f32.mxu0 0.0
        %749 = vmatmul.mubr.f32.gmra.mrb[0].mxu0 %v616
        %v750 = vpop.f32.mrb[0].mxu0
        %v751 = vadd.f32 0.0, %v750
        %v752 = vpop.f32.mrb[0].mxu0
        %753 = vmatprep.mubr.f32.mxu0 0.0
        %754 = vmatmul.mubr.f32.gmra.mrb[0].mxu0 %v617
        %v755 = vpop.f32.mrb[0].mxu0
        %v756 = vpop.f32.mrb[0].mxu0
        %757 = vmatprep.mubr.f32.mxu0 0.0
        %758 = vmatmul.mubr.f32.gmra.mrb[0].mxu0 %v618
        %v759 = vpop.f32.mrb[0].mxu0
        %v760 = vadd.f32 0.0, %v759
        %v761 = vpop.f32.mrb[0].mxu0
        %762 = vmatprep.mubr.f32.mxu0 0.0
        %763 = vmatmul.mubr.f32.gmra.mrb[0].mxu0 %v619
        %v764 = vpop.f32.mrb[0].mxu0
        %v765 = vpop.f32.mrb[0].mxu0
        %766 = vmatprep.mubr.f32.mxu0 0.0
        %767 = vmatmul.mubr.f32.gmra.mrb[0].mxu0 %v620
        %v768 = vpop.f32.mrb[0].mxu0
        %v769 = vadd.f32 0.0, %v768
        %v770 = vpop.f32.mrb[0].mxu0
        %771 = vmatprep.mubr.f32.mxu0 0.0
        %772 = vmatmul.mubr.f32.gmra.mrb[0].mxu0 %v621
        %v773 = vpop.f32.mrb[0].mxu0
        %v774 = vpop.f32.mrb[0].mxu0
        %775 = vdwg.mxu0
        %776 = vmatprep.subr.mxu0 0.0
        %777 = vmatpush1.msra.mxu0 %v556
        %778 = vmatprep.subr.mxu0 0.0
        %779 = vmatpush1.msra.mxu0 %v557
        %780 = vmatprep.subr.mxu0 0.0
        %781 = vmatpush1.msra.mxu0 %v558
        %782 = vmatprep.subr.mxu0 0.0
        %783 = vmatpush1.msra.mxu0 %v559
        %784 = vmatprep.subr.mxu0 0.0
        %785 = vmatpush1.msra.mxu0 %v560
        %786 = vmatprep.subr.mxu0 0.0
        %787 = vmatpush1.msra.mxu0 %v561
        %788 = vmatprep.subr.mxu0 0.0
        %789 = vmatpush1.msra.mxu0 %v562
        %790 = vmatprep.subr.mxu0 0.0
        %791 = vmatpush1.msra.mxu0 %v563
        %792 = vmatprep.subr.mxu0 0.0
        %793 = vmatpush1.msra.mxu0 %v564
        %794 = vmatprep.subr.mxu0 0.0
        %795 = vmatpush1.msra.mxu0 %v565
        %796 = vmatprep.subr.mxu0 0.0
        %797 = vmatpush1.msra.mxu0 %v566
        %798 = vmatprep.subr.mxu0 0.0
        %799 = vmatpush1.msra.mxu0 %v567
        %800 = vmatprep.subr.mxu0 0.0
        %801 = vmatpush1.msra.mxu0 %v568
        %802 = vmatprep.subr.mxu0 0.0
        %803 = vmatpush1.msra.mxu0 %v569
        %804 = vmatprep.subr.mxu0 0.0
        %805 = vmatpush1.msra.mxu0 %v570
        %806 = vmatprep.subr.mxu0 0.0
        %807 = vmatpush1.msra.mxu0 %v571
        %808 = vmatprep.subr.mxu0 0.0
        %809 = vmatpush1.msra.mxu0 0.0
        %810 = vmatprep.subr.mxu0 0.0
        %811 = vmatpush1.msra.mxu0 0.0
        %812 = vmatprep.subr.mxu0 0.0
        %813 = vmatpush1.msra.mxu0 0.0
        %814 = vmatprep.subr.mxu0 0.0
        %815 = vmatpush1.msra.mxu0 0.0
        %816 = vmatprep.subr.mxu0 0.0
        %817 = vmatpush1.msra.mxu0 0.0
        %818 = vmatprep.subr.mxu0 0.0
        %819 = vmatpush1.msra.mxu0 0.0
        %820 = vmatprep.subr.mxu0 0.0
        %821 = vmatpush1.msra.mxu0 0.0
        %822 = vmatprep.subr.mxu0 0.0
        %823 = vmatpush1.msra.mxu0 0.0
        %824 = vmatprep.subr.mxu0 0.0
        %825 = vmatpush1.msra.mxu0 0.0
        %826 = vmatprep.subr.mxu0 0.0
        %827 = vmatpush1.msra.mxu0 0.0
        %828 = vmatprep.subr.mxu0 0.0
        %829 = vmatpush1.msra.mxu0 0.0
        %830 = vmatprep.subr.mxu0 0.0
        %831 = vmatpush1.msra.mxu0 0.0
        %832 = vmatprep.subr.mxu0 0.0
        %833 = vmatpush1.msra.mxu0 0.0
        %834 = vmatprep.subr.mxu0 0.0
        %835 = vmatpush1.msra.mxu0 0.0
        %836 = vmatprep.subr.mxu0 0.0
        %837 = vmatpush1.msra.mxu0 0.0
        %838 = vmatprep.subr.mxu0 0.0
        %839 = vmatpush1.msra.mxu0 0.0
        %840 = vmatprep.mubr.f32.mxu0 0.0
        %841 = vmatmul.mubr.f32.gmra.mrb[0].mxu0 %v540
        %v842 = vpop.f32.mrb[0].mxu0
        %v843 = vadd.f32 %v706, %v842
        %v844 = vpop.f32.mrb[0].mxu0
        %845 = vmatprep.mubr.f32.mxu0 0.0
        %846 = vmatmul.mubr.f32.gmra.mrb[0].mxu0 %v541
        %v847 = vpop.f32.mrb[0].mxu0
        %v848 = vpop.f32.mrb[0].mxu0
        %849 = vmatprep.mubr.f32.mxu0 0.0
        %850 = vmatmul.mubr.f32.gmra.mrb[0].mxu0 %v542
        %v851 = vpop.f32.mrb[0].mxu0
        %v852 = vadd.f32 %v715, %v851
        %v853 = vpop.f32.mrb[0].mxu0
        %854 = vmatprep.mubr.f32.mxu0 0.0
        %855 = vmatmul.mubr.f32.gmra.mrb[0].mxu0 %v543
        %v856 = vpop.f32.mrb[0].mxu0
        %v857 = vpop.f32.mrb[0].mxu0
        %858 = vmatprep.mubr.f32.mxu0 0.0
        %859 = vmatmul.mubr.f32.gmra.mrb[0].mxu0 %v544
        %v860 = vpop.f32.mrb[0].mxu0
        %v861 = vadd.f32 %v724, %v860
        %v862 = vpop.f32.mrb[0].mxu0
        %863 = vmatprep.mubr.f32.mxu0 0.0
        %864 = vmatmul.mubr.f32.gmra.mrb[0].mxu0 %v545
        %v865 = vpop.f32.mrb[0].mxu0
        %v866 = vpop.f32.mrb[0].mxu0
        %867 = vmatprep.mubr.f32.mxu0 0.0
        %868 = vmatmul.mubr.f32.gmra.mrb[0].mxu0 %v546
        %v869 = vpop.f32.mrb[0].mxu0
        %v870 = vadd.f32 %v733, %v869
        %v871 = vpop.f32.mrb[0].mxu0
        %872 = vmatprep.mubr.f32.mxu0 0.0
        %873 = vmatmul.mubr.f32.gmra.mrb[0].mxu0 %v547
        %v874 = vpop.f32.mrb[0].mxu0
        %v875 = vpop.f32.mrb[0].mxu0
        %876 = vmatprep.mubr.f32.mxu0 0.0
        %877 = vmatmul.mubr.f32.gmra.mrb[0].mxu0 %v548
        %v878 = vpop.f32.mrb[0].mxu0
        %v879 = vadd.f32 %v742, %v878
        %v880 = vpop.f32.mrb[0].mxu0
        %881 = vmatprep.mubr.f32.mxu0 0.0
        %882 = vmatmul.mubr.f32.gmra.mrb[0].mxu0 %v549
        %v883 = vpop.f32.mrb[0].mxu0
        %v884 = vpop.f32.mrb[0].mxu0
        %885 = vmatprep.mubr.f32.mxu0 0.0
        %886 = vmatmul.mubr.f32.gmra.mrb[0].mxu0 %v550
        %v887 = vpop.f32.mrb[0].mxu0
        %v888 = vadd.f32 %v751, %v887
        %v889 = vpop.f32.mrb[0].mxu0
        %890 = vmatprep.mubr.f32.mxu0 0.0
        %891 = vmatmul.mubr.f32.gmra.mrb[0].mxu0 %v551
        %v892 = vpop.f32.mrb[0].mxu0
        %v893 = vpop.f32.mrb[0].mxu0
        %894 = vmatprep.mubr.f32.mxu0 0.0
        %895 = vmatmul.mubr.f32.gmra.mrb[0].mxu0 %v552
        %v896 = vpop.f32.mrb[0].mxu0
        %v897 = vadd.f32 %v760, %v896
        %v898 = vpop.f32.mrb[0].mxu0
        %899 = vmatprep.mubr.f32.mxu0 0.0
        %900 = vmatmul.mubr.f32.gmra.mrb[0].mxu0 %v553
        %v901 = vpop.f32.mrb[0].mxu0
        %v902 = vpop.f32.mrb[0].mxu0
        %903 = vmatprep.mubr.f32.mxu0 0.0
        %904 = vmatmul.mubr.f32.gmra.mrb[0].mxu0 %v554
        %v905 = vpop.f32.mrb[0].mxu0
        %v906 = vadd.f32 %v769, %v905
        %v907 = vpop.f32.mrb[0].mxu0
        %908 = vmatprep.mubr.f32.mxu0 0.0
        %909 = vmatmul.mubr.f32.gmra.mrb[0].mxu0 %v555
        %v910 = vpop.f32.mrb[0].mxu0
        %v911 = vpop.f32.mrb[0].mxu0
        %912 = vdwg.mxu0
        %s913 = scalar_lea.vmem %s4, 512
        %v914 = vld [vmem:[%s913] sm:$0xff]
        %v915 = vld [vmem:[%s913 + $0x8] sm:$0xff]
        %v916 = vld [vmem:[%s913 + $0x10] sm:$0xff]
        %v917 = vld [vmem:[%s913 + $0x18] sm:$0xff]
        %v918 = vld [vmem:[%s913 + $0x20] sm:$0xff]
        %v919 = vld [vmem:[%s913 + $0x28] sm:$0xff]
        %v920 = vld [vmem:[%s913 + $0x30] sm:$0xff]
        %v921 = vld [vmem:[%s913 + $0x38] sm:$0xff]
        %v922 = vld [vmem:[%s913 + $0x40] sm:$0xff]
        %v923 = vld [vmem:[%s913 + $0x48] sm:$0xff]
        %v924 = vld [vmem:[%s913 + $0x50] sm:$0xff]
        %v925 = vld [vmem:[%s913 + $0x58] sm:$0xff]
        %v926 = vld [vmem:[%s913 + $0x60] sm:$0xff]
        %v927 = vld [vmem:[%s913 + $0x68] sm:$0xff]
        %v928 = vld [vmem:[%s913 + $0x70] sm:$0xff]
        %v929 = vld [vmem:[%s913 + $0x78] sm:$0xff]
        %930 = vmatprep.subr.mxu0 0.0
        %931 = vmatpush1.msra.mxu0 %v914
        %932 = vmatprep.subr.mxu0 0.0
        %933 = vmatpush1.msra.mxu0 %v915
        %934 = vmatprep.subr.mxu0 0.0
        %935 = vmatpush1.msra.mxu0 %v916
        %936 = vmatprep.subr.mxu0 0.0
        %937 = vmatpush1.msra.mxu0 %v917
        %938 = vmatprep.subr.mxu0 0.0
        %939 = vmatpush1.msra.mxu0 %v918
        %940 = vmatprep.subr.mxu0 0.0
        %941 = vmatpush1.msra.mxu0 %v919
        %942 = vmatprep.subr.mxu0 0.0
        %943 = vmatpush1.msra.mxu0 %v920
        %944 = vmatprep.subr.mxu0 0.0
        %945 = vmatpush1.msra.mxu0 %v921
        %946 = vmatprep.subr.mxu0 0.0
        %947 = vmatpush1.msra.mxu0 %v922
        %948 = vmatprep.subr.mxu0 0.0
        %949 = vmatpush1.msra.mxu0 %v923
        %950 = vmatprep.subr.mxu0 0.0
        %951 = vmatpush1.msra.mxu0 %v924
        %952 = vmatprep.subr.mxu0 0.0
        %953 = vmatpush1.msra.mxu0 %v925
        %954 = vmatprep.subr.mxu0 0.0
        %955 = vmatpush1.msra.mxu0 %v926
        %956 = vmatprep.subr.mxu0 0.0
        %957 = vmatpush1.msra.mxu0 %v927
        %958 = vmatprep.subr.mxu0 0.0
        %959 = vmatpush1.msra.mxu0 %v928
        %960 = vmatprep.subr.mxu0 0.0
        %961 = vmatpush1.msra.mxu0 %v929
        %962 = vmatprep.subr.mxu0 0.0
        %963 = vmatpush1.msra.mxu0 0.0
        %964 = vmatprep.subr.mxu0 0.0
        %965 = vmatpush1.msra.mxu0 0.0
        %966 = vmatprep.subr.mxu0 0.0
        %967 = vmatpush1.msra.mxu0 0.0
        %968 = vmatprep.subr.mxu0 0.0
        %969 = vmatpush1.msra.mxu0 0.0
        %970 = vmatprep.subr.mxu0 0.0
        %971 = vmatpush1.msra.mxu0 0.0
        %972 = vmatprep.subr.mxu0 0.0
        %973 = vmatpush1.msra.mxu0 0.0
        %974 = vmatprep.subr.mxu0 0.0
        %975 = vmatpush1.msra.mxu0 0.0
        %976 = vmatprep.subr.mxu0 0.0
        %977 = vmatpush1.msra.mxu0 0.0
        %978 = vmatprep.subr.mxu0 0.0
        %979 = vmatpush1.msra.mxu0 0.0
        %980 = vmatprep.subr.mxu0 0.0
        %981 = vmatpush1.msra.mxu0 0.0
        %982 = vmatprep.subr.mxu0 0.0
        %983 = vmatpush1.msra.mxu0 0.0
        %984 = vmatprep.subr.mxu0 0.0
        %985 = vmatpush1.msra.mxu0 0.0
        %986 = vmatprep.subr.mxu0 0.0
        %987 = vmatpush1.msra.mxu0 0.0
        %988 = vmatprep.subr.mxu0 0.0
        %989 = vmatpush1.msra.mxu0 0.0
        %990 = vmatprep.subr.mxu0 0.0
        %991 = vmatpush1.msra.mxu0 0.0
        %992 = vmatprep.subr.mxu0 0.0
        %993 = vmatpush1.msra.mxu0 0.0
        %994 = vmatprep.mubr.f32.mxu0 0.0
        %995 = vmatmul.mubr.f32.gmra.mrb[0].mxu0 %v606
        %v996 = vpop.f32.mrb[0].mxu0
        %v997 = vadd.f32 0.0, %v996
        %v998 = vpop.f32.mrb[0].mxu0
        %999 = vmatprep.mubr.f32.mxu0 0.0
        %1000 = vmatmul.mubr.f32.gmra.mrb[0].mxu0 %v607
        %v1001 = vpop.f32.mrb[0].mxu0
        %v1002 = vadd.f32 0.0, %v1001
        %v1003 = vpop.f32.mrb[0].mxu0
        %1004 = vmatprep.mubr.f32.mxu0 0.0
        %1005 = vmatmul.mubr.f32.gmra.mrb[0].mxu0 %v608
        %v1006 = vpop.f32.mrb[0].mxu0
        %v1007 = vadd.f32 0.0, %v1006
        %v1008 = vpop.f32.mrb[0].mxu0
        %1009 = vmatprep.mubr.f32.mxu0 0.0
        %1010 = vmatmul.mubr.f32.gmra.mrb[0].mxu0 %v609
        %v1011 = vpop.f32.mrb[0].mxu0
        %v1012 = vadd.f32 0.0, %v1011
        %v1013 = vpop.f32.mrb[0].mxu0
        %1014 = vmatprep.mubr.f32.mxu0 0.0
        %1015 = vmatmul.mubr.f32.gmra.mrb[0].mxu0 %v610
        %v1016 = vpop.f32.mrb[0].mxu0
        %v1017 = vadd.f32 0.0, %v1016
        %v1018 = vpop.f32.mrb[0].mxu0
        %1019 = vmatprep.mubr.f32.mxu0 0.0
        %1020 = vmatmul.mubr.f32.gmra.mrb[0].mxu0 %v611
        %v1021 = vpop.f32.mrb[0].mxu0
        %v1022 = vadd.f32 0.0, %v1021
        %v1023 = vpop.f32.mrb[0].mxu0
        %1024 = vmatprep.mubr.f32.mxu0 0.0
        %1025 = vmatmul.mubr.f32.gmra.mrb[0].mxu0 %v612
        %v1026 = vpop.f32.mrb[0].mxu0
        %v1027 = vadd.f32 0.0, %v1026
        %v1028 = vpop.f32.mrb[0].mxu0
        %1029 = vmatprep.mubr.f32.mxu0 0.0
        %1030 = vmatmul.mubr.f32.gmra.mrb[0].mxu0 %v613
        %v1031 = vpop.f32.mrb[0].mxu0
        %v1032 = vadd.f32 0.0, %v1031
        %v1033 = vpop.f32.mrb[0].mxu0
        %1034 = vmatprep.mubr.f32.mxu0 0.0
        %1035 = vmatmul.mubr.f32.gmra.mrb[0].mxu0 %v614
        %v1036 = vpop.f32.mrb[0].mxu0
        %v1037 = vadd.f32 0.0, %v1036
        %v1038 = vpop.f32.mrb[0].mxu0
        %1039 = vmatprep.mubr.f32.mxu0 0.0
        %1040 = vmatmul.mubr.f32.gmra.mrb[0].mxu0 %v615
        %v1041 = vpop.f32.mrb[0].mxu0
        %v1042 = vadd.f32 0.0, %v1041
        %v1043 = vpop.f32.mrb[0].mxu0
        %1044 = vmatprep.mubr.f32.mxu0 0.0
        %1045 = vmatmul.mubr.f32.gmra.mrb[0].mxu0 %v616
        %v1046 = vpop.f32.mrb[0].mxu0
        %v1047 = vadd.f32 0.0, %v1046
        %v1048 = vpop.f32.mrb[0].mxu0
        %1049 = vmatprep.mubr.f32.mxu0 0.0
        %1050 = vmatmul.mubr.f32.gmra.mrb[0].mxu0 %v617
        %v1051 = vpop.f32.mrb[0].mxu0
        %v1052 = vadd.f32 0.0, %v1051
        %v1053 = vpop.f32.mrb[0].mxu0
        %1054 = vmatprep.mubr.f32.mxu0 0.0
        %1055 = vmatmul.mubr.f32.gmra.mrb[0].mxu0 %v618
        %v1056 = vpop.f32.mrb[0].mxu0
        %v1057 = vadd.f32 0.0, %v1056
        %v1058 = vpop.f32.mrb[0].mxu0
        %1059 = vmatprep.mubr.f32.mxu0 0.0
        %1060 = vmatmul.mubr.f32.gmra.mrb[0].mxu0 %v619
        %v1061 = vpop.f32.mrb[0].mxu0
        %v1062 = vadd.f32 0.0, %v1061
        %v1063 = vpop.f32.mrb[0].mxu0
        %1064 = vmatprep.mubr.f32.mxu0 0.0
        %1065 = vmatmul.mubr.f32.gmra.mrb[0].mxu0 %v620
        %v1066 = vpop.f32.mrb[0].mxu0
        %v1067 = vadd.f32 0.0, %v1066
        %v1068 = vpop.f32.mrb[0].mxu0
        %1069 = vmatprep.mubr.f32.mxu0 0.0
        %1070 = vmatmul.mubr.f32.gmra.mrb[0].mxu0 %v621
        %v1071 = vpop.f32.mrb[0].mxu0
        %v1072 = vadd.f32 0.0, %v1071
        %v1073 = vpop.f32.mrb[0].mxu0
        %1074 = vdwg.mxu0
        %1075 = vmatprep.subr.mxu0 0.0
        %1076 = vmatpush1.msra.mxu0 %v573
        %1077 = vmatprep.subr.mxu0 0.0
        %1078 = vmatpush1.msra.mxu0 %v574
        %1079 = vmatprep.subr.mxu0 0.0
        %1080 = vmatpush1.msra.mxu0 %v575
        %1081 = vmatprep.subr.mxu0 0.0
        %1082 = vmatpush1.msra.mxu0 %v576
        %1083 = vmatprep.subr.mxu0 0.0
        %1084 = vmatpush1.msra.mxu0 %v577
        %1085 = vmatprep.subr.mxu0 0.0
        %1086 = vmatpush1.msra.mxu0 %v578
        %1087 = vmatprep.subr.mxu0 0.0
        %1088 = vmatpush1.msra.mxu0 %v579
        %1089 = vmatprep.subr.mxu0 0.0
        %1090 = vmatpush1.msra.mxu0 %v580
        %1091 = vmatprep.subr.mxu0 0.0
        %1092 = vmatpush1.msra.mxu0 %v581
        %1093 = vmatprep.subr.mxu0 0.0
        %1094 = vmatpush1.msra.mxu0 %v582
        %1095 = vmatprep.subr.mxu0 0.0
        %1096 = vmatpush1.msra.mxu0 %v583
        %1097 = vmatprep.subr.mxu0 0.0
        %1098 = vmatpush1.msra.mxu0 %v584
        %1099 = vmatprep.subr.mxu0 0.0
        %1100 = vmatpush1.msra.mxu0 %v585
        %1101 = vmatprep.subr.mxu0 0.0
        %1102 = vmatpush1.msra.mxu0 %v586
        %1103 = vmatprep.subr.mxu0 0.0
        %1104 = vmatpush1.msra.mxu0 %v587
        %1105 = vmatprep.subr.mxu0 0.0
        %1106 = vmatpush1.msra.mxu0 %v588
        %1107 = vmatprep.subr.mxu0 0.0
        %1108 = vmatpush1.msra.mxu0 0.0
        %1109 = vmatprep.subr.mxu0 0.0
        %1110 = vmatpush1.msra.mxu0 0.0
        %1111 = vmatprep.subr.mxu0 0.0
        %1112 = vmatpush1.msra.mxu0 0.0
        %1113 = vmatprep.subr.mxu0 0.0
        %1114 = vmatpush1.msra.mxu0 0.0
        %1115 = vmatprep.subr.mxu0 0.0
        %1116 = vmatpush1.msra.mxu0 0.0
        %1117 = vmatprep.subr.mxu0 0.0
        %1118 = vmatpush1.msra.mxu0 0.0
        %1119 = vmatprep.subr.mxu0 0.0
        %1120 = vmatpush1.msra.mxu0 0.0
        %1121 = vmatprep.subr.mxu0 0.0
        %1122 = vmatpush1.msra.mxu0 0.0
        %1123 = vmatprep.subr.mxu0 0.0
        %1124 = vmatpush1.msra.mxu0 0.0
        %1125 = vmatprep.subr.mxu0 0.0
        %1126 = vmatpush1.msra.mxu0 0.0
        %1127 = vmatprep.subr.mxu0 0.0
        %1128 = vmatpush1.msra.mxu0 0.0
        %1129 = vmatprep.subr.mxu0 0.0
        %1130 = vmatpush1.msra.mxu0 0.0
        %1131 = vmatprep.subr.mxu0 0.0
        %1132 = vmatpush1.msra.mxu0 0.0
        %1133 = vmatprep.subr.mxu0 0.0
        %1134 = vmatpush1.msra.mxu0 0.0
        %1135 = vmatprep.subr.mxu0 0.0
        %1136 = vmatpush1.msra.mxu0 0.0
        %1137 = vmatprep.subr.mxu0 0.0
        %1138 = vmatpush1.msra.mxu0 0.0
        %1139 = vmatprep.mubr.f32.mxu0 0.0
        %1140 = vmatmul.mubr.f32.gmra.mrb[0].mxu0 %v540
        %v1141 = vpop.f32.mrb[0].mxu0
        %v1142 = vadd.f32 %v997, %v1141
        %v1143 = vpop.f32.mrb[0].mxu0
        %1144 = vmatprep.mubr.f32.mxu0 0.0
        %1145 = vmatmul.mubr.f32.gmra.mrb[0].mxu0 %v541
        %v1146 = vpop.f32.mrb[0].mxu0
        %v1147 = vadd.f32 %v1002, %v1146
        %v1148 = vpop.f32.mrb[0].mxu0
        %1149 = vmatprep.mubr.f32.mxu0 0.0
        %1150 = vmatmul.mubr.f32.gmra.mrb[0].mxu0 %v542
        %v1151 = vpop.f32.mrb[0].mxu0
        %v1152 = vadd.f32 %v1007, %v1151
        %v1153 = vpop.f32.mrb[0].mxu0
        %1154 = vmatprep.mubr.f32.mxu0 0.0
        %1155 = vmatmul.mubr.f32.gmra.mrb[0].mxu0 %v543
        %v1156 = vpop.f32.mrb[0].mxu0
        %v1157 = vadd.f32 %v1012, %v1156
        %v1158 = vpop.f32.mrb[0].mxu0
        %1159 = vmatprep.mubr.f32.mxu0 0.0
        %1160 = vmatmul.mubr.f32.gmra.mrb[0].mxu0 %v544
        %v1161 = vpop.f32.mrb[0].mxu0
        %v1162 = vadd.f32 %v1017, %v1161
        %v1163 = vpop.f32.mrb[0].mxu0
        %1164 = vmatprep.mubr.f32.mxu0 0.0
        %1165 = vmatmul.mubr.f32.gmra.mrb[0].mxu0 %v545
        %v1166 = vpop.f32.mrb[0].mxu0
        %v1167 = vadd.f32 %v1022, %v1166
        %v1168 = vpop.f32.mrb[0].mxu0
        %1169 = vmatprep.mubr.f32.mxu0 0.0
        %1170 = vmatmul.mubr.f32.gmra.mrb[0].mxu0 %v546
        %v1171 = vpop.f32.mrb[0].mxu0
        %v1172 = vadd.f32 %v1027, %v1171
        %v1173 = vpop.f32.mrb[0].mxu0
        %1174 = vmatprep.mubr.f32.mxu0 0.0
        %1175 = vmatmul.mubr.f32.gmra.mrb[0].mxu0 %v547
        %v1176 = vpop.f32.mrb[0].mxu0
        %v1177 = vadd.f32 %v1032, %v1176
        %v1178 = vpop.f32.mrb[0].mxu0
        %1179 = vmatprep.mubr.f32.mxu0 0.0
        %1180 = vmatmul.mubr.f32.gmra.mrb[0].mxu0 %v548
        %v1181 = vpop.f32.mrb[0].mxu0
        %v1182 = vadd.f32 %v1037, %v1181
        %v1183 = vpop.f32.mrb[0].mxu0
        %1184 = vmatprep.mubr.f32.mxu0 0.0
        %1185 = vmatmul.mubr.f32.gmra.mrb[0].mxu0 %v549
        %v1186 = vpop.f32.mrb[0].mxu0
        %v1187 = vadd.f32 %v1042, %v1186
        %v1188 = vpop.f32.mrb[0].mxu0
        %1189 = vmatprep.mubr.f32.mxu0 0.0
        %1190 = vmatmul.mubr.f32.gmra.mrb[0].mxu0 %v550
        %v1191 = vpop.f32.mrb[0].mxu0
        %v1192 = vadd.f32 %v1047, %v1191
        %v1193 = vpop.f32.mrb[0].mxu0
        %1194 = vmatprep.mubr.f32.mxu0 0.0
        %1195 = vmatmul.mubr.f32.gmra.mrb[0].mxu0 %v551
        %v1196 = vpop.f32.mrb[0].mxu0
        %v1197 = vadd.f32 %v1052, %v1196
        %v1198 = vpop.f32.mrb[0].mxu0
        %1199 = vmatprep.mubr.f32.mxu0 0.0
        %1200 = vmatmul.mubr.f32.gmra.mrb[0].mxu0 %v552
        %v1201 = vpop.f32.mrb[0].mxu0
        %v1202 = vadd.f32 %v1057, %v1201
        %v1203 = vpop.f32.mrb[0].mxu0
        %1204 = vmatprep.mubr.f32.mxu0 0.0
        %1205 = vmatmul.mubr.f32.gmra.mrb[0].mxu0 %v553
        %v1206 = vpop.f32.mrb[0].mxu0
        %v1207 = vadd.f32 %v1062, %v1206
        %v1208 = vpop.f32.mrb[0].mxu0
        %1209 = vmatprep.mubr.f32.mxu0 0.0
        %1210 = vmatmul.mubr.f32.gmra.mrb[0].mxu0 %v554
        %v1211 = vpop.f32.mrb[0].mxu0
        %v1212 = vadd.f32 %v1067, %v1211
        %v1213 = vpop.f32.mrb[0].mxu0
        %1214 = vmatprep.mubr.f32.mxu0 0.0
        %1215 = vmatmul.mubr.f32.gmra.mrb[0].mxu0 %v555
        %v1216 = vpop.f32.mrb[0].mxu0
        %v1217 = vadd.f32 %v1072, %v1216
        %v1218 = vpop.f32.mrb[0].mxu0
        %1219 = vdwg.mxu0
        %s1220 = scalar_lea.vmem %s4, 640
        %v1221 = vld [vmem:[%s1220] sm:$0xff]
        %v1222 = vld [vmem:[%s1220 + $0x8] sm:$0xff]
        %v1223 = vld [vmem:[%s1220 + $0x10] sm:$0xff]
        %v1224 = vld [vmem:[%s1220 + $0x18] sm:$0xff]
        %v1225 = vld [vmem:[%s1220 + $0x20] sm:$0xff]
        %v1226 = vld [vmem:[%s1220 + $0x28] sm:$0xff]
        %v1227 = vld [vmem:[%s1220 + $0x30] sm:$0xff]
        %v1228 = vld [vmem:[%s1220 + $0x38] sm:$0xff]
        %v1229 = vld [vmem:[%s1220 + $0x40] sm:$0xff]
        %v1230 = vld [vmem:[%s1220 + $0x48] sm:$0xff]
        %v1231 = vld [vmem:[%s1220 + $0x50] sm:$0xff]
        %v1232 = vld [vmem:[%s1220 + $0x58] sm:$0xff]
        %v1233 = vld [vmem:[%s1220 + $0x60] sm:$0xff]
        %v1234 = vld [vmem:[%s1220 + $0x68] sm:$0xff]
        %v1235 = vld [vmem:[%s1220 + $0x70] sm:$0xff]
        %v1236 = vld [vmem:[%s1220 + $0x78] sm:$0xff]
        %1237 = vmatprep.subr.mxu0 0.0
        %1238 = vmatpush1.msra.mxu0 %v1221
        %1239 = vmatprep.subr.mxu0 0.0
        %1240 = vmatpush1.msra.mxu0 %v1222
        %1241 = vmatprep.subr.mxu0 0.0
        %1242 = vmatpush1.msra.mxu0 %v1223
        %1243 = vmatprep.subr.mxu0 0.0
        %1244 = vmatpush1.msra.mxu0 %v1224
        %1245 = vmatprep.subr.mxu0 0.0
        %1246 = vmatpush1.msra.mxu0 %v1225
        %1247 = vmatprep.subr.mxu0 0.0
        %1248 = vmatpush1.msra.mxu0 %v1226
        %1249 = vmatprep.subr.mxu0 0.0
        %1250 = vmatpush1.msra.mxu0 %v1227
        %1251 = vmatprep.subr.mxu0 0.0
        %1252 = vmatpush1.msra.mxu0 %v1228
        %1253 = vmatprep.subr.mxu0 0.0
        %1254 = vmatpush1.msra.mxu0 %v1229
        %1255 = vmatprep.subr.mxu0 0.0
        %1256 = vmatpush1.msra.mxu0 %v1230
        %1257 = vmatprep.subr.mxu0 0.0
        %1258 = vmatpush1.msra.mxu0 %v1231
        %1259 = vmatprep.subr.mxu0 0.0
        %1260 = vmatpush1.msra.mxu0 %v1232
        %1261 = vmatprep.subr.mxu0 0.0
        %1262 = vmatpush1.msra.mxu0 %v1233
        %1263 = vmatprep.subr.mxu0 0.0
        %1264 = vmatpush1.msra.mxu0 %v1234
        %1265 = vmatprep.subr.mxu0 0.0
        %1266 = vmatpush1.msra.mxu0 %v1235
        %1267 = vmatprep.subr.mxu0 0.0
        %1268 = vmatpush1.msra.mxu0 %v1236
        %1269 = vmatprep.subr.mxu0 0.0
        %1270 = vmatpush1.msra.mxu0 0.0
        %1271 = vmatprep.subr.mxu0 0.0
        %1272 = vmatpush1.msra.mxu0 0.0
        %1273 = vmatprep.subr.mxu0 0.0
        %1274 = vmatpush1.msra.mxu0 0.0
        %1275 = vmatprep.subr.mxu0 0.0
        %1276 = vmatpush1.msra.mxu0 0.0
        %1277 = vmatprep.subr.mxu0 0.0
        %1278 = vmatpush1.msra.mxu0 0.0
        %1279 = vmatprep.subr.mxu0 0.0
        %1280 = vmatpush1.msra.mxu0 0.0
        %1281 = vmatprep.subr.mxu0 0.0
        %1282 = vmatpush1.msra.mxu0 0.0
        %1283 = vmatprep.subr.mxu0 0.0
        %1284 = vmatpush1.msra.mxu0 0.0
        %1285 = vmatprep.subr.mxu0 0.0
        %1286 = vmatpush1.msra.mxu0 0.0
        %1287 = vmatprep.subr.mxu0 0.0
        %1288 = vmatpush1.msra.mxu0 0.0
        %1289 = vmatprep.subr.mxu0 0.0
        %1290 = vmatpush1.msra.mxu0 0.0
        %1291 = vmatprep.subr.mxu0 0.0
        %1292 = vmatpush1.msra.mxu0 0.0
        %1293 = vmatprep.subr.mxu0 0.0
        %1294 = vmatpush1.msra.mxu0 0.0
        %1295 = vmatprep.subr.mxu0 0.0
        %1296 = vmatpush1.msra.mxu0 0.0
        %1297 = vmatprep.subr.mxu0 0.0
        %1298 = vmatpush1.msra.mxu0 0.0
        %1299 = vmatprep.subr.mxu0 0.0
        %1300 = vmatpush1.msra.mxu0 0.0
        %1301 = vmatprep.mubr.f32.mxu0 0.0
        %1302 = vmatmul.mubr.f32.gmra.mrb[0].mxu0 %v606
        %v1303 = vpop.f32.mrb[0].mxu0
        %v1304 = vadd.f32 0.0, %v1303
        %v1305 = vpop.f32.mrb[0].mxu0
        %1306 = vmatprep.mubr.f32.mxu0 0.0
        %1307 = vmatmul.mubr.f32.gmra.mrb[0].mxu0 %v607
        %v1308 = vpop.f32.mrb[0].mxu0
        %v1309 = vadd.f32 0.0, %v1308
        %v1310 = vpop.f32.mrb[0].mxu0
        %1311 = vmatprep.mubr.f32.mxu0 0.0
        %1312 = vmatmul.mubr.f32.gmra.mrb[0].mxu0 %v608
        %v1313 = vpop.f32.mrb[0].mxu0
        %v1314 = vadd.f32 0.0, %v1313
        %v1315 = vpop.f32.mrb[0].mxu0
        %1316 = vmatprep.mubr.f32.mxu0 0.0
        %1317 = vmatmul.mubr.f32.gmra.mrb[0].mxu0 %v609
        %v1318 = vpop.f32.mrb[0].mxu0
        %v1319 = vadd.f32 0.0, %v1318
        %v1320 = vpop.f32.mrb[0].mxu0
        %1321 = vmatprep.mubr.f32.mxu0 0.0
        %1322 = vmatmul.mubr.f32.gmra.mrb[0].mxu0 %v610
        %v1323 = vpop.f32.mrb[0].mxu0
        %v1324 = vadd.f32 0.0, %v1323
        %v1325 = vpop.f32.mrb[0].mxu0
        %1326 = vmatprep.mubr.f32.mxu0 0.0
        %1327 = vmatmul.mubr.f32.gmra.mrb[0].mxu0 %v611
        %v1328 = vpop.f32.mrb[0].mxu0
        %v1329 = vadd.f32 0.0, %v1328
        %v1330 = vpop.f32.mrb[0].mxu0
        %1331 = vmatprep.mubr.f32.mxu0 0.0
        %1332 = vmatmul.mubr.f32.gmra.mrb[0].mxu0 %v612
        %v1333 = vpop.f32.mrb[0].mxu0
        %v1334 = vadd.f32 0.0, %v1333
        %v1335 = vpop.f32.mrb[0].mxu0
        %1336 = vmatprep.mubr.f32.mxu0 0.0
        %1337 = vmatmul.mubr.f32.gmra.mrb[0].mxu0 %v613
        %v1338 = vpop.f32.mrb[0].mxu0
        %v1339 = vadd.f32 0.0, %v1338
        %v1340 = vpop.f32.mrb[0].mxu0
        %1341 = vmatprep.mubr.f32.mxu0 0.0
        %1342 = vmatmul.mubr.f32.gmra.mrb[0].mxu0 %v614
        %v1343 = vpop.f32.mrb[0].mxu0
        %v1344 = vadd.f32 0.0, %v1343
        %v1345 = vpop.f32.mrb[0].mxu0
        %1346 = vmatprep.mubr.f32.mxu0 0.0
        %1347 = vmatmul.mubr.f32.gmra.mrb[0].mxu0 %v615
        %v1348 = vpop.f32.mrb[0].mxu0
        %v1349 = vadd.f32 0.0, %v1348
        %v1350 = vpop.f32.mrb[0].mxu0
        %1351 = vmatprep.mubr.f32.mxu0 0.0
        %1352 = vmatmul.mubr.f32.gmra.mrb[0].mxu0 %v616
        %v1353 = vpop.f32.mrb[0].mxu0
        %v1354 = vadd.f32 0.0, %v1353
        %v1355 = vpop.f32.mrb[0].mxu0
        %1356 = vmatprep.mubr.f32.mxu0 0.0
        %1357 = vmatmul.mubr.f32.gmra.mrb[0].mxu0 %v617
        %v1358 = vpop.f32.mrb[0].mxu0
        %v1359 = vadd.f32 0.0, %v1358
        %v1360 = vpop.f32.mrb[0].mxu0
        %1361 = vmatprep.mubr.f32.mxu0 0.0
        %1362 = vmatmul.mubr.f32.gmra.mrb[0].mxu0 %v618
        %v1363 = vpop.f32.mrb[0].mxu0
        %v1364 = vadd.f32 0.0, %v1363
        %v1365 = vpop.f32.mrb[0].mxu0
        %1366 = vmatprep.mubr.f32.mxu0 0.0
        %1367 = vmatmul.mubr.f32.gmra.mrb[0].mxu0 %v619
        %v1368 = vpop.f32.mrb[0].mxu0
        %v1369 = vadd.f32 0.0, %v1368
        %v1370 = vpop.f32.mrb[0].mxu0
        %1371 = vmatprep.mubr.f32.mxu0 0.0
        %1372 = vmatmul.mubr.f32.gmra.mrb[0].mxu0 %v620
        %v1373 = vpop.f32.mrb[0].mxu0
        %v1374 = vadd.f32 0.0, %v1373
        %v1375 = vpop.f32.mrb[0].mxu0
        %1376 = vmatprep.mubr.f32.mxu0 0.0
        %1377 = vmatmul.mubr.f32.gmra.mrb[0].mxu0 %v621
        %v1378 = vpop.f32.mrb[0].mxu0
        %v1379 = vadd.f32 0.0, %v1378
        %v1380 = vpop.f32.mrb[0].mxu0
        %1381 = vdwg.mxu0
        %1382 = vmatprep.subr.mxu0 0.0
        %1383 = vmatpush1.msra.mxu0 %v590
        %1384 = vmatprep.subr.mxu0 0.0
        %1385 = vmatpush1.msra.mxu0 %v591
        %1386 = vmatprep.subr.mxu0 0.0
        %1387 = vmatpush1.msra.mxu0 %v592
        %1388 = vmatprep.subr.mxu0 0.0
        %1389 = vmatpush1.msra.mxu0 %v593
        %1390 = vmatprep.subr.mxu0 0.0
        %1391 = vmatpush1.msra.mxu0 %v594
        %1392 = vmatprep.subr.mxu0 0.0
        %1393 = vmatpush1.msra.mxu0 %v595
        %1394 = vmatprep.subr.mxu0 0.0
        %1395 = vmatpush1.msra.mxu0 %v596
        %1396 = vmatprep.subr.mxu0 0.0
        %1397 = vmatpush1.msra.mxu0 %v597
        %1398 = vmatprep.subr.mxu0 0.0
        %1399 = vmatpush1.msra.mxu0 %v598
        %1400 = vmatprep.subr.mxu0 0.0
        %1401 = vmatpush1.msra.mxu0 %v599
        %1402 = vmatprep.subr.mxu0 0.0
        %1403 = vmatpush1.msra.mxu0 %v600
        %1404 = vmatprep.subr.mxu0 0.0
        %1405 = vmatpush1.msra.mxu0 %v601
        %1406 = vmatprep.subr.mxu0 0.0
        %1407 = vmatpush1.msra.mxu0 %v602
        %1408 = vmatprep.subr.mxu0 0.0
        %1409 = vmatpush1.msra.mxu0 %v603
        %1410 = vmatprep.subr.mxu0 0.0
        %1411 = vmatpush1.msra.mxu0 %v604
        %1412 = vmatprep.subr.mxu0 0.0
        %1413 = vmatpush1.msra.mxu0 %v605
        %1414 = vmatprep.subr.mxu0 0.0
        %1415 = vmatpush1.msra.mxu0 0.0
        %1416 = vmatprep.subr.mxu0 0.0
        %1417 = vmatpush1.msra.mxu0 0.0
        %1418 = vmatprep.subr.mxu0 0.0
        %1419 = vmatpush1.msra.mxu0 0.0
        %1420 = vmatprep.subr.mxu0 0.0
        %1421 = vmatpush1.msra.mxu0 0.0
        %1422 = vmatprep.subr.mxu0 0.0
        %1423 = vmatpush1.msra.mxu0 0.0
        %1424 = vmatprep.subr.mxu0 0.0
        %1425 = vmatpush1.msra.mxu0 0.0
        %1426 = vmatprep.subr.mxu0 0.0
        %1427 = vmatpush1.msra.mxu0 0.0
        %1428 = vmatprep.subr.mxu0 0.0
        %1429 = vmatpush1.msra.mxu0 0.0
        %1430 = vmatprep.subr.mxu0 0.0
        %1431 = vmatpush1.msra.mxu0 0.0
        %1432 = vmatprep.subr.mxu0 0.0
        %1433 = vmatpush1.msra.mxu0 0.0
        %1434 = vmatprep.subr.mxu0 0.0
        %1435 = vmatpush1.msra.mxu0 0.0
        %1436 = vmatprep.subr.mxu0 0.0
        %1437 = vmatpush1.msra.mxu0 0.0
        %1438 = vmatprep.subr.mxu0 0.0
        %1439 = vmatpush1.msra.mxu0 0.0
        %1440 = vmatprep.subr.mxu0 0.0
        %1441 = vmatpush1.msra.mxu0 0.0
        %1442 = vmatprep.subr.mxu0 0.0
        %1443 = vmatpush1.msra.mxu0 0.0
        %1444 = vmatprep.subr.mxu0 0.0
        %1445 = vmatpush1.msra.mxu0 0.0
        %1446 = vmatprep.mubr.f32.mxu0 0.0
        %1447 = vmatmul.mubr.f32.gmra.mrb[0].mxu0 %v540
        %v1448 = vpop.f32.mrb[0].mxu0
        %v1449 = vadd.f32 %v1304, %v1448
        %v1450 = vpop.f32.mrb[0].mxu0
        %1451 = vmatprep.mubr.f32.mxu0 0.0
        %1452 = vmatmul.mubr.f32.gmra.mrb[0].mxu0 %v541
        %v1453 = vpop.f32.mrb[0].mxu0
        %v1454 = vadd.f32 %v1309, %v1453
        %v1455 = vpop.f32.mrb[0].mxu0
        %1456 = vmatprep.mubr.f32.mxu0 0.0
        %1457 = vmatmul.mubr.f32.gmra.mrb[0].mxu0 %v542
        %v1458 = vpop.f32.mrb[0].mxu0
        %v1459 = vadd.f32 %v1314, %v1458
        %v1460 = vpop.f32.mrb[0].mxu0
        %1461 = vmatprep.mubr.f32.mxu0 0.0
        %1462 = vmatmul.mubr.f32.gmra.mrb[0].mxu0 %v543
        %v1463 = vpop.f32.mrb[0].mxu0
        %v1464 = vadd.f32 %v1319, %v1463
        %v1465 = vpop.f32.mrb[0].mxu0
        %1466 = vmatprep.mubr.f32.mxu0 0.0
        %1467 = vmatmul.mubr.f32.gmra.mrb[0].mxu0 %v544
        %v1468 = vpop.f32.mrb[0].mxu0
        %v1469 = vadd.f32 %v1324, %v1468
        %v1470 = vpop.f32.mrb[0].mxu0
        %1471 = vmatprep.mubr.f32.mxu0 0.0
        %1472 = vmatmul.mubr.f32.gmra.mrb[0].mxu0 %v545
        %v1473 = vpop.f32.mrb[0].mxu0
        %v1474 = vadd.f32 %v1329, %v1473
        %v1475 = vpop.f32.mrb[0].mxu0
        %1476 = vmatprep.mubr.f32.mxu0 0.0
        %1477 = vmatmul.mubr.f32.gmra.mrb[0].mxu0 %v546
        %v1478 = vpop.f32.mrb[0].mxu0
        %v1479 = vadd.f32 %v1334, %v1478
        %v1480 = vpop.f32.mrb[0].mxu0
        %1481 = vmatprep.mubr.f32.mxu0 0.0
        %1482 = vmatmul.mubr.f32.gmra.mrb[0].mxu0 %v547
        %v1483 = vpop.f32.mrb[0].mxu0
        %v1484 = vadd.f32 %v1339, %v1483
        %v1485 = vpop.f32.mrb[0].mxu0
        %1486 = vmatprep.mubr.f32.mxu0 0.0
        %1487 = vmatmul.mubr.f32.gmra.mrb[0].mxu0 %v548
        %v1488 = vpop.f32.mrb[0].mxu0
        %v1489 = vadd.f32 %v1344, %v1488
        %v1490 = vpop.f32.mrb[0].mxu0
        %1491 = vmatprep.mubr.f32.mxu0 0.0
        %1492 = vmatmul.mubr.f32.gmra.mrb[0].mxu0 %v549
        %v1493 = vpop.f32.mrb[0].mxu0
        %v1494 = vadd.f32 %v1349, %v1493
        %v1495 = vpop.f32.mrb[0].mxu0
        %1496 = vmatprep.mubr.f32.mxu0 0.0
        %1497 = vmatmul.mubr.f32.gmra.mrb[0].mxu0 %v550
        %v1498 = vpop.f32.mrb[0].mxu0
        %v1499 = vadd.f32 %v1354, %v1498
        %v1500 = vpop.f32.mrb[0].mxu0
        %1501 = vmatprep.mubr.f32.mxu0 0.0
        %1502 = vmatmul.mubr.f32.gmra.mrb[0].mxu0 %v551
        %v1503 = vpop.f32.mrb[0].mxu0
        %v1504 = vadd.f32 %v1359, %v1503
        %v1505 = vpop.f32.mrb[0].mxu0
        %1506 = vmatprep.mubr.f32.mxu0 0.0
        %1507 = vmatmul.mubr.f32.gmra.mrb[0].mxu0 %v552
        %v1508 = vpop.f32.mrb[0].mxu0
        %v1509 = vadd.f32 %v1364, %v1508
        %v1510 = vpop.f32.mrb[0].mxu0
        %1511 = vmatprep.mubr.f32.mxu0 0.0
        %1512 = vmatmul.mubr.f32.gmra.mrb[0].mxu0 %v553
        %v1513 = vpop.f32.mrb[0].mxu0
        %v1514 = vadd.f32 %v1369, %v1513
        %v1515 = vpop.f32.mrb[0].mxu0
        %1516 = vmatprep.mubr.f32.mxu0 0.0
        %1517 = vmatmul.mubr.f32.gmra.mrb[0].mxu0 %v554
        %v1518 = vpop.f32.mrb[0].mxu0
        %v1519 = vadd.f32 %v1374, %v1518
        %v1520 = vpop.f32.mrb[0].mxu0
        %1521 = vmatprep.mubr.f32.mxu0 0.0
        %1522 = vmatmul.mubr.f32.gmra.mrb[0].mxu0 %v555
        %v1523 = vpop.f32.mrb[0].mxu0
        %v1524 = vadd.f32 %v1379, %v1523
        %v1525 = vpop.f32.mrb[0].mxu0
        %1526 = vdwg.mxu0
        %s1527 = scalar_lea.vmem [#allocation2], 32
        %v1528 = vld [vmem:[%s1527] sm:$0xff]
        %v1529 = vld [vmem:[%s1527 + $0x8] sm:$0xff]
        %v1530 = vld [vmem:[%s1527 + $0x10] sm:$0xff]
        %v1531 = vld [vmem:[%s1527 + $0x18] sm:$0xff]
        %v1532 = vld [vmem:[%s1527 + $0x20] sm:$0xff]
        %v1533 = vld [vmem:[%s1527 + $0x28] sm:$0xff]
        %v1534 = vld [vmem:[%s1527 + $0x30] sm:$0xff]
        %v1535 = vld [vmem:[%s1527 + $0x38] sm:$0xff]
        %v1536 = vld [vmem:[%s1527 + $0x40] sm:$0xff]
        %v1537 = vld [vmem:[%s1527 + $0x48] sm:$0xff]
        %v1538 = vld [vmem:[%s1527 + $0x50] sm:$0xff]
        %v1539 = vld [vmem:[%s1527 + $0x58] sm:$0xff]
        %v1540 = vld [vmem:[%s1527 + $0x60] sm:$0xff]
        %v1541 = vld [vmem:[%s1527 + $0x68] sm:$0xff]
        %v1542 = vld [vmem:[%s1527 + $0x70] sm:$0xff]
        %v1543 = vld [vmem:[%s1527 + $0x78] sm:$0xff]
        %s1544 = scalar_lea.vmem %s4, 768
        %v1545 = vld [vmem:[%s1544] sm:$0xff]
        %v1546 = vld [vmem:[%s1544 + $0x8] sm:$0xff]
        %v1547 = vld [vmem:[%s1544 + $0x10] sm:$0xff]
        %v1548 = vld [vmem:[%s1544 + $0x18] sm:$0xff]
        %v1549 = vld [vmem:[%s1544 + $0x20] sm:$0xff]
        %v1550 = vld [vmem:[%s1544 + $0x28] sm:$0xff]
        %v1551 = vld [vmem:[%s1544 + $0x30] sm:$0xff]
        %v1552 = vld [vmem:[%s1544 + $0x38] sm:$0xff]
        %v1553 = vld [vmem:[%s1544 + $0x40] sm:$0xff]
        %v1554 = vld [vmem:[%s1544 + $0x48] sm:$0xff]
        %v1555 = vld [vmem:[%s1544 + $0x50] sm:$0xff]
        %v1556 = vld [vmem:[%s1544 + $0x58] sm:$0xff]
        %v1557 = vld [vmem:[%s1544 + $0x60] sm:$0xff]
        %v1558 = vld [vmem:[%s1544 + $0x68] sm:$0xff]
        %v1559 = vld [vmem:[%s1544 + $0x70] sm:$0xff]
        %v1560 = vld [vmem:[%s1544 + $0x78] sm:$0xff]
        %1561 = vmatprep.subr.mxu0 0.0
        %1562 = vmatpush1.msra.mxu0 %v1545
        %1563 = vmatprep.subr.mxu0 0.0
        %1564 = vmatpush1.msra.mxu0 %v1546
        %1565 = vmatprep.subr.mxu0 0.0
        %1566 = vmatpush1.msra.mxu0 %v1547
        %1567 = vmatprep.subr.mxu0 0.0
        %1568 = vmatpush1.msra.mxu0 %v1548
        %1569 = vmatprep.subr.mxu0 0.0
        %1570 = vmatpush1.msra.mxu0 %v1549
        %1571 = vmatprep.subr.mxu0 0.0
        %1572 = vmatpush1.msra.mxu0 %v1550
        %1573 = vmatprep.subr.mxu0 0.0
        %1574 = vmatpush1.msra.mxu0 %v1551
        %1575 = vmatprep.subr.mxu0 0.0
        %1576 = vmatpush1.msra.mxu0 %v1552
        %1577 = vmatprep.subr.mxu0 0.0
        %1578 = vmatpush1.msra.mxu0 %v1553
        %1579 = vmatprep.subr.mxu0 0.0
        %1580 = vmatpush1.msra.mxu0 %v1554
        %1581 = vmatprep.subr.mxu0 0.0
        %1582 = vmatpush1.msra.mxu0 %v1555
        %1583 = vmatprep.subr.mxu0 0.0
        %1584 = vmatpush1.msra.mxu0 %v1556
        %1585 = vmatprep.subr.mxu0 0.0
        %1586 = vmatpush1.msra.mxu0 %v1557
        %1587 = vmatprep.subr.mxu0 0.0
        %1588 = vmatpush1.msra.mxu0 %v1558
        %1589 = vmatprep.subr.mxu0 0.0
        %1590 = vmatpush1.msra.mxu0 %v1559
        %1591 = vmatprep.subr.mxu0 0.0
        %1592 = vmatpush1.msra.mxu0 %v1560
        %1593 = vmatprep.subr.mxu0 0.0
        %1594 = vmatpush1.msra.mxu0 0.0
        %1595 = vmatprep.subr.mxu0 0.0
        %1596 = vmatpush1.msra.mxu0 0.0
        %1597 = vmatprep.subr.mxu0 0.0
        %1598 = vmatpush1.msra.mxu0 0.0
        %1599 = vmatprep.subr.mxu0 0.0
        %1600 = vmatpush1.msra.mxu0 0.0
        %1601 = vmatprep.subr.mxu0 0.0
        %1602 = vmatpush1.msra.mxu0 0.0
        %1603 = vmatprep.subr.mxu0 0.0
        %1604 = vmatpush1.msra.mxu0 0.0
        %1605 = vmatprep.subr.mxu0 0.0
        %1606 = vmatpush1.msra.mxu0 0.0
        %1607 = vmatprep.subr.mxu0 0.0
        %1608 = vmatpush1.msra.mxu0 0.0
        %1609 = vmatprep.subr.mxu0 0.0
        %1610 = vmatpush1.msra.mxu0 0.0
        %1611 = vmatprep.subr.mxu0 0.0
        %1612 = vmatpush1.msra.mxu0 0.0
        %1613 = vmatprep.subr.mxu0 0.0
        %1614 = vmatpush1.msra.mxu0 0.0
        %1615 = vmatprep.subr.mxu0 0.0
        %1616 = vmatpush1.msra.mxu0 0.0
        %1617 = vmatprep.subr.mxu0 0.0
        %1618 = vmatpush1.msra.mxu0 0.0
        %1619 = vmatprep.subr.mxu0 0.0
        %1620 = vmatpush1.msra.mxu0 0.0
        %1621 = vmatprep.subr.mxu0 0.0
        %1622 = vmatpush1.msra.mxu0 0.0
        %1623 = vmatprep.subr.mxu0 0.0
        %1624 = vmatpush1.msra.mxu0 0.0
        %1625 = vmatprep.mubr.f32.mxu0 0.0
        %1626 = vmatmul.mubr.f32.gmra.mrb[0].mxu0 %v1528
        %v1627 = vpop.f32.mrb[0].mxu0
        %v1628 = vadd.f32 0.0, %v1627
        %v1629 = vpop.f32.mrb[0].mxu0
        %1630 = vmatprep.mubr.f32.mxu0 0.0
        %1631 = vmatmul.mubr.f32.gmra.mrb[0].mxu0 %v1529
        %v1632 = vpop.f32.mrb[0].mxu0
        %v1633 = vpop.f32.mrb[0].mxu0
        %1634 = vmatprep.mubr.f32.mxu0 0.0
        %1635 = vmatmul.mubr.f32.gmra.mrb[0].mxu0 %v1530
        %v1636 = vpop.f32.mrb[0].mxu0
        %v1637 = vadd.f32 0.0, %v1636
        %v1638 = vpop.f32.mrb[0].mxu0
        %1639 = vmatprep.mubr.f32.mxu0 0.0
        %1640 = vmatmul.mubr.f32.gmra.mrb[0].mxu0 %v1531
        %v1641 = vpop.f32.mrb[0].mxu0
        %v1642 = vpop.f32.mrb[0].mxu0
        %1643 = vmatprep.mubr.f32.mxu0 0.0
        %1644 = vmatmul.mubr.f32.gmra.mrb[0].mxu0 %v1532
        %v1645 = vpop.f32.mrb[0].mxu0
        %v1646 = vadd.f32 0.0, %v1645
        %v1647 = vpop.f32.mrb[0].mxu0
        %1648 = vmatprep.mubr.f32.mxu0 0.0
        %1649 = vmatmul.mubr.f32.gmra.mrb[0].mxu0 %v1533
        %v1650 = vpop.f32.mrb[0].mxu0
        %v1651 = vpop.f32.mrb[0].mxu0
        %1652 = vmatprep.mubr.f32.mxu0 0.0
        %1653 = vmatmul.mubr.f32.gmra.mrb[0].mxu0 %v1534
        %v1654 = vpop.f32.mrb[0].mxu0
        %v1655 = vadd.f32 0.0, %v1654
        %v1656 = vpop.f32.mrb[0].mxu0
        %1657 = vmatprep.mubr.f32.mxu0 0.0
        %1658 = vmatmul.mubr.f32.gmra.mrb[0].mxu0 %v1535
        %v1659 = vpop.f32.mrb[0].mxu0
        %v1660 = vpop.f32.mrb[0].mxu0
        %1661 = vmatprep.mubr.f32.mxu0 0.0
        %1662 = vmatmul.mubr.f32.gmra.mrb[0].mxu0 %v1536
        %v1663 = vpop.f32.mrb[0].mxu0
        %v1664 = vadd.f32 0.0, %v1663
        %v1665 = vpop.f32.mrb[0].mxu0
        %1666 = vmatprep.mubr.f32.mxu0 0.0
        %1667 = vmatmul.mubr.f32.gmra.mrb[0].mxu0 %v1537
        %v1668 = vpop.f32.mrb[0].mxu0
        %v1669 = vpop.f32.mrb[0].mxu0
        %1670 = vmatprep.mubr.f32.mxu0 0.0
        %1671 = vmatmul.mubr.f32.gmra.mrb[0].mxu0 %v1538
        %v1672 = vpop.f32.mrb[0].mxu0
        %v1673 = vadd.f32 0.0, %v1672
        %v1674 = vpop.f32.mrb[0].mxu0
        %1675 = vmatprep.mubr.f32.mxu0 0.0
        %1676 = vmatmul.mubr.f32.gmra.mrb[0].mxu0 %v1539
        %v1677 = vpop.f32.mrb[0].mxu0
        %v1678 = vpop.f32.mrb[0].mxu0
        %1679 = vmatprep.mubr.f32.mxu0 0.0
        %1680 = vmatmul.mubr.f32.gmra.mrb[0].mxu0 %v1540
        %v1681 = vpop.f32.mrb[0].mxu0
        %v1682 = vadd.f32 0.0, %v1681
        %v1683 = vpop.f32.mrb[0].mxu0
        %1684 = vmatprep.mubr.f32.mxu0 0.0
        %1685 = vmatmul.mubr.f32.gmra.mrb[0].mxu0 %v1541
        %v1686 = vpop.f32.mrb[0].mxu0
        %v1687 = vpop.f32.mrb[0].mxu0
        %1688 = vmatprep.mubr.f32.mxu0 0.0
        %1689 = vmatmul.mubr.f32.gmra.mrb[0].mxu0 %v1542
        %v1690 = vpop.f32.mrb[0].mxu0
        %v1691 = vadd.f32 0.0, %v1690
        %v1692 = vpop.f32.mrb[0].mxu0
        %1693 = vmatprep.mubr.f32.mxu0 0.0
        %1694 = vmatmul.mubr.f32.gmra.mrb[0].mxu0 %v1543
        %v1695 = vpop.f32.mrb[0].mxu0
        %v1696 = vpop.f32.mrb[0].mxu0
        %1697 = vdwg.mxu0
        %v1698 = vadd.f32 %v843, %v1628
        %v1699 = vadd.f32 %v852, %v1637
        %v1700 = vadd.f32 %v861, %v1646
        %v1701 = vadd.f32 %v870, %v1655
        %v1702 = vadd.f32 %v879, %v1664
        %v1703 = vadd.f32 %v888, %v1673
        %v1704 = vadd.f32 %v897, %v1682
        %v1705 = vadd.f32 %v906, %v1691
        %s1706 = scalar_lea.vmem %s4, 896
        %v1707 = vld [vmem:[%s1706] sm:$0xff]
        %v1708 = vld [vmem:[%s1706 + $0x8] sm:$0xff]
        %v1709 = vld [vmem:[%s1706 + $0x10] sm:$0xff]
        %v1710 = vld [vmem:[%s1706 + $0x18] sm:$0xff]
        %v1711 = vld [vmem:[%s1706 + $0x20] sm:$0xff]
        %v1712 = vld [vmem:[%s1706 + $0x28] sm:$0xff]
        %v1713 = vld [vmem:[%s1706 + $0x30] sm:$0xff]
        %v1714 = vld [vmem:[%s1706 + $0x38] sm:$0xff]
        %v1715 = vld [vmem:[%s1706 + $0x40] sm:$0xff]
        %v1716 = vld [vmem:[%s1706 + $0x48] sm:$0xff]
        %v1717 = vld [vmem:[%s1706 + $0x50] sm:$0xff]
        %v1718 = vld [vmem:[%s1706 + $0x58] sm:$0xff]
        %v1719 = vld [vmem:[%s1706 + $0x60] sm:$0xff]
        %v1720 = vld [vmem:[%s1706 + $0x68] sm:$0xff]
        %v1721 = vld [vmem:[%s1706 + $0x70] sm:$0xff]
        %v1722 = vld [vmem:[%s1706 + $0x78] sm:$0xff]
        %1723 = vmatprep.subr.mxu0 0.0
        %1724 = vmatpush1.msra.mxu0 %v1707
        %1725 = vmatprep.subr.mxu0 0.0
        %1726 = vmatpush1.msra.mxu0 %v1708
        %1727 = vmatprep.subr.mxu0 0.0
        %1728 = vmatpush1.msra.mxu0 %v1709
        %1729 = vmatprep.subr.mxu0 0.0
        %1730 = vmatpush1.msra.mxu0 %v1710
        %1731 = vmatprep.subr.mxu0 0.0
        %1732 = vmatpush1.msra.mxu0 %v1711
        %1733 = vmatprep.subr.mxu0 0.0
        %1734 = vmatpush1.msra.mxu0 %v1712
        %1735 = vmatprep.subr.mxu0 0.0
        %1736 = vmatpush1.msra.mxu0 %v1713
        %1737 = vmatprep.subr.mxu0 0.0
        %1738 = vmatpush1.msra.mxu0 %v1714
        %1739 = vmatprep.subr.mxu0 0.0
        %1740 = vmatpush1.msra.mxu0 %v1715
        %1741 = vmatprep.subr.mxu0 0.0
        %1742 = vmatpush1.msra.mxu0 %v1716
        %1743 = vmatprep.subr.mxu0 0.0
        %1744 = vmatpush1.msra.mxu0 %v1717
        %1745 = vmatprep.subr.mxu0 0.0
        %1746 = vmatpush1.msra.mxu0 %v1718
        %1747 = vmatprep.subr.mxu0 0.0
        %1748 = vmatpush1.msra.mxu0 %v1719
        %1749 = vmatprep.subr.mxu0 0.0
        %1750 = vmatpush1.msra.mxu0 %v1720
        %1751 = vmatprep.subr.mxu0 0.0
        %1752 = vmatpush1.msra.mxu0 %v1721
        %1753 = vmatprep.subr.mxu0 0.0
        %1754 = vmatpush1.msra.mxu0 %v1722
        %1755 = vmatprep.subr.mxu0 0.0
        %1756 = vmatpush1.msra.mxu0 0.0
        %1757 = vmatprep.subr.mxu0 0.0
        %1758 = vmatpush1.msra.mxu0 0.0
        %1759 = vmatprep.subr.mxu0 0.0
        %1760 = vmatpush1.msra.mxu0 0.0
        %1761 = vmatprep.subr.mxu0 0.0
        %1762 = vmatpush1.msra.mxu0 0.0
        %1763 = vmatprep.subr.mxu0 0.0
        %1764 = vmatpush1.msra.mxu0 0.0
        %1765 = vmatprep.subr.mxu0 0.0
        %1766 = vmatpush1.msra.mxu0 0.0
        %1767 = vmatprep.subr.mxu0 0.0
        %1768 = vmatpush1.msra.mxu0 0.0
        %1769 = vmatprep.subr.mxu0 0.0
        %1770 = vmatpush1.msra.mxu0 0.0
        %1771 = vmatprep.subr.mxu0 0.0
        %1772 = vmatpush1.msra.mxu0 0.0
        %1773 = vmatprep.subr.mxu0 0.0
        %1774 = vmatpush1.msra.mxu0 0.0
        %1775 = vmatprep.subr.mxu0 0.0
        %1776 = vmatpush1.msra.mxu0 0.0
        %1777 = vmatprep.subr.mxu0 0.0
        %1778 = vmatpush1.msra.mxu0 0.0
        %1779 = vmatprep.subr.mxu0 0.0
        %1780 = vmatpush1.msra.mxu0 0.0
        %1781 = vmatprep.subr.mxu0 0.0
        %1782 = vmatpush1.msra.mxu0 0.0
        %1783 = vmatprep.subr.mxu0 0.0
        %1784 = vmatpush1.msra.mxu0 0.0
        %1785 = vmatprep.subr.mxu0 0.0
        %1786 = vmatpush1.msra.mxu0 0.0
        %1787 = vmatprep.mubr.f32.mxu0 0.0
        %1788 = vmatmul.mubr.f32.gmra.mrb[0].mxu0 %v1528
        %v1789 = vpop.f32.mrb[0].mxu0
        %v1790 = vadd.f32 0.0, %v1789
        %v1791 = vpop.f32.mrb[0].mxu0
        %1792 = vmatprep.mubr.f32.mxu0 0.0
        %1793 = vmatmul.mubr.f32.gmra.mrb[0].mxu0 %v1529
        %v1794 = vpop.f32.mrb[0].mxu0
        %v1795 = vadd.f32 0.0, %v1794
        %v1796 = vpop.f32.mrb[0].mxu0
        %1797 = vmatprep.mubr.f32.mxu0 0.0
        %1798 = vmatmul.mubr.f32.gmra.mrb[0].mxu0 %v1530
        %v1799 = vpop.f32.mrb[0].mxu0
        %v1800 = vadd.f32 0.0, %v1799
        %v1801 = vpop.f32.mrb[0].mxu0
        %1802 = vmatprep.mubr.f32.mxu0 0.0
        %1803 = vmatmul.mubr.f32.gmra.mrb[0].mxu0 %v1531
        %v1804 = vpop.f32.mrb[0].mxu0
        %v1805 = vadd.f32 0.0, %v1804
        %v1806 = vpop.f32.mrb[0].mxu0
        %1807 = vmatprep.mubr.f32.mxu0 0.0
        %1808 = vmatmul.mubr.f32.gmra.mrb[0].mxu0 %v1532
        %v1809 = vpop.f32.mrb[0].mxu0
        %v1810 = vadd.f32 0.0, %v1809
        %v1811 = vpop.f32.mrb[0].mxu0
        %1812 = vmatprep.mubr.f32.mxu0 0.0
        %1813 = vmatmul.mubr.f32.gmra.mrb[0].mxu0 %v1533
        %v1814 = vpop.f32.mrb[0].mxu0
        %v1815 = vadd.f32 0.0, %v1814
        %v1816 = vpop.f32.mrb[0].mxu0
        %1817 = vmatprep.mubr.f32.mxu0 0.0
        %1818 = vmatmul.mubr.f32.gmra.mrb[0].mxu0 %v1534
        %v1819 = vpop.f32.mrb[0].mxu0
        %v1820 = vadd.f32 0.0, %v1819
        %v1821 = vpop.f32.mrb[0].mxu0
        %1822 = vmatprep.mubr.f32.mxu0 0.0
        %1823 = vmatmul.mubr.f32.gmra.mrb[0].mxu0 %v1535
        %v1824 = vpop.f32.mrb[0].mxu0
        %v1825 = vadd.f32 0.0, %v1824
        %v1826 = vpop.f32.mrb[0].mxu0
        %1827 = vmatprep.mubr.f32.mxu0 0.0
        %1828 = vmatmul.mubr.f32.gmra.mrb[0].mxu0 %v1536
        %v1829 = vpop.f32.mrb[0].mxu0
        %v1830 = vadd.f32 0.0, %v1829
        %v1831 = vpop.f32.mrb[0].mxu0
        %1832 = vmatprep.mubr.f32.mxu0 0.0
        %1833 = vmatmul.mubr.f32.gmra.mrb[0].mxu0 %v1537
        %v1834 = vpop.f32.mrb[0].mxu0
        %v1835 = vadd.f32 0.0, %v1834
        %v1836 = vpop.f32.mrb[0].mxu0
        %1837 = vmatprep.mubr.f32.mxu0 0.0
        %1838 = vmatmul.mubr.f32.gmra.mrb[0].mxu0 %v1538
        %v1839 = vpop.f32.mrb[0].mxu0
        %v1840 = vadd.f32 0.0, %v1839
        %v1841 = vpop.f32.mrb[0].mxu0
        %1842 = vmatprep.mubr.f32.mxu0 0.0
        %1843 = vmatmul.mubr.f32.gmra.mrb[0].mxu0 %v1539
        %v1844 = vpop.f32.mrb[0].mxu0
        %v1845 = vadd.f32 0.0, %v1844
        %v1846 = vpop.f32.mrb[0].mxu0
        %1847 = vmatprep.mubr.f32.mxu0 0.0
        %1848 = vmatmul.mubr.f32.gmra.mrb[0].mxu0 %v1540
        %v1849 = vpop.f32.mrb[0].mxu0
        %v1850 = vadd.f32 0.0, %v1849
        %v1851 = vpop.f32.mrb[0].mxu0
        %1852 = vmatprep.mubr.f32.mxu0 0.0
        %1853 = vmatmul.mubr.f32.gmra.mrb[0].mxu0 %v1541
        %v1854 = vpop.f32.mrb[0].mxu0
        %v1855 = vadd.f32 0.0, %v1854
        %v1856 = vpop.f32.mrb[0].mxu0
        %1857 = vmatprep.mubr.f32.mxu0 0.0
        %1858 = vmatmul.mubr.f32.gmra.mrb[0].mxu0 %v1542
        %v1859 = vpop.f32.mrb[0].mxu0
        %v1860 = vadd.f32 0.0, %v1859
        %v1861 = vpop.f32.mrb[0].mxu0
        %1862 = vmatprep.mubr.f32.mxu0 0.0
        %1863 = vmatmul.mubr.f32.gmra.mrb[0].mxu0 %v1543
        %v1864 = vpop.f32.mrb[0].mxu0
        %v1865 = vadd.f32 0.0, %v1864
        %v1866 = vpop.f32.mrb[0].mxu0
        %1867 = vdwg.mxu0
        %v1868 = vadd.f32 %v1142, %v1790
        %v1869 = vadd.f32 %v1147, %v1795
        %v1870 = vadd.f32 %v1152, %v1800
        %v1871 = vadd.f32 %v1157, %v1805
        %v1872 = vadd.f32 %v1162, %v1810
        %v1873 = vadd.f32 %v1167, %v1815
        %v1874 = vadd.f32 %v1172, %v1820
        %v1875 = vadd.f32 %v1177, %v1825
        %v1876 = vadd.f32 %v1182, %v1830
        %v1877 = vadd.f32 %v1187, %v1835
        %v1878 = vadd.f32 %v1192, %v1840
        %v1879 = vadd.f32 %v1197, %v1845
        %v1880 = vadd.f32 %v1202, %v1850
        %v1881 = vadd.f32 %v1207, %v1855
        %v1882 = vadd.f32 %v1212, %v1860
        %v1883 = vadd.f32 %v1217, %v1865
        %s1884 = scalar_lea.vmem %s4, 1024
        %v1885 = vld [vmem:[%s1884] sm:$0xff]
        %v1886 = vld [vmem:[%s1884 + $0x8] sm:$0xff]
        %v1887 = vld [vmem:[%s1884 + $0x10] sm:$0xff]
        %v1888 = vld [vmem:[%s1884 + $0x18] sm:$0xff]
        %v1889 = vld [vmem:[%s1884 + $0x20] sm:$0xff]
        %v1890 = vld [vmem:[%s1884 + $0x28] sm:$0xff]
        %v1891 = vld [vmem:[%s1884 + $0x30] sm:$0xff]
        %v1892 = vld [vmem:[%s1884 + $0x38] sm:$0xff]
        %v1893 = vld [vmem:[%s1884 + $0x40] sm:$0xff]
        %v1894 = vld [vmem:[%s1884 + $0x48] sm:$0xff]
        %v1895 = vld [vmem:[%s1884 + $0x50] sm:$0xff]
        %v1896 = vld [vmem:[%s1884 + $0x58] sm:$0xff]
        %v1897 = vld [vmem:[%s1884 + $0x60] sm:$0xff]
        %v1898 = vld [vmem:[%s1884 + $0x68] sm:$0xff]
        %v1899 = vld [vmem:[%s1884 + $0x70] sm:$0xff]
        %v1900 = vld [vmem:[%s1884 + $0x78] sm:$0xff]
        %1901 = vmatprep.subr.mxu0 0.0
        %1902 = vmatpush1.msra.mxu0 %v1885
        %1903 = vmatprep.subr.mxu0 0.0
        %1904 = vmatpush1.msra.mxu0 %v1886
        %1905 = vmatprep.subr.mxu0 0.0
        %1906 = vmatpush1.msra.mxu0 %v1887
        %1907 = vmatprep.subr.mxu0 0.0
        %1908 = vmatpush1.msra.mxu0 %v1888
        %1909 = vmatprep.subr.mxu0 0.0
        %1910 = vmatpush1.msra.mxu0 %v1889
        %1911 = vmatprep.subr.mxu0 0.0
        %1912 = vmatpush1.msra.mxu0 %v1890
        %1913 = vmatprep.subr.mxu0 0.0
        %1914 = vmatpush1.msra.mxu0 %v1891
        %1915 = vmatprep.subr.mxu0 0.0
        %1916 = vmatpush1.msra.mxu0 %v1892
        %1917 = vmatprep.subr.mxu0 0.0
        %1918 = vmatpush1.msra.mxu0 %v1893
        %1919 = vmatprep.subr.mxu0 0.0
        %1920 = vmatpush1.msra.mxu0 %v1894
        %1921 = vmatprep.subr.mxu0 0.0
        %1922 = vmatpush1.msra.mxu0 %v1895
        %1923 = vmatprep.subr.mxu0 0.0
        %1924 = vmatpush1.msra.mxu0 %v1896
        %1925 = vmatprep.subr.mxu0 0.0
        %1926 = vmatpush1.msra.mxu0 %v1897
        %1927 = vmatprep.subr.mxu0 0.0
        %1928 = vmatpush1.msra.mxu0 %v1898
        %1929 = vmatprep.subr.mxu0 0.0
        %1930 = vmatpush1.msra.mxu0 %v1899
        %1931 = vmatprep.subr.mxu0 0.0
        %1932 = vmatpush1.msra.mxu0 %v1900
        %1933 = vmatprep.subr.mxu0 0.0
        %1934 = vmatpush1.msra.mxu0 0.0
        %1935 = vmatprep.subr.mxu0 0.0
        %1936 = vmatpush1.msra.mxu0 0.0
        %1937 = vmatprep.subr.mxu0 0.0
        %1938 = vmatpush1.msra.mxu0 0.0
        %1939 = vmatprep.subr.mxu0 0.0
        %1940 = vmatpush1.msra.mxu0 0.0
        %1941 = vmatprep.subr.mxu0 0.0
        %1942 = vmatpush1.msra.mxu0 0.0
        %1943 = vmatprep.subr.mxu0 0.0
        %1944 = vmatpush1.msra.mxu0 0.0
        %1945 = vmatprep.subr.mxu0 0.0
        %1946 = vmatpush1.msra.mxu0 0.0
        %1947 = vmatprep.subr.mxu0 0.0
        %1948 = vmatpush1.msra.mxu0 0.0
        %1949 = vmatprep.subr.mxu0 0.0
        %1950 = vmatpush1.msra.mxu0 0.0
        %1951 = vmatprep.subr.mxu0 0.0
        %1952 = vmatpush1.msra.mxu0 0.0
        %1953 = vmatprep.subr.mxu0 0.0
        %1954 = vmatpush1.msra.mxu0 0.0
        %1955 = vmatprep.subr.mxu0 0.0
        %1956 = vmatpush1.msra.mxu0 0.0
        %1957 = vmatprep.subr.mxu0 0.0
        %1958 = vmatpush1.msra.mxu0 0.0
        %1959 = vmatprep.subr.mxu0 0.0
        %1960 = vmatpush1.msra.mxu0 0.0
        %1961 = vmatprep.subr.mxu0 0.0
        %1962 = vmatpush1.msra.mxu0 0.0
        %1963 = vmatprep.subr.mxu0 0.0
        %1964 = vmatpush1.msra.mxu0 0.0
        %1965 = vmatprep.mubr.f32.mxu0 0.0
        %1966 = vmatmul.mubr.f32.gmra.mrb[0].mxu0 %v1528
        %v1967 = vpop.f32.mrb[0].mxu0
        %v1968 = vadd.f32 0.0, %v1967
        %v1969 = vpop.f32.mrb[0].mxu0
        %1970 = vmatprep.mubr.f32.mxu0 0.0
        %1971 = vmatmul.mubr.f32.gmra.mrb[0].mxu0 %v1529
        %v1972 = vpop.f32.mrb[0].mxu0
        %v1973 = vadd.f32 0.0, %v1972
        %v1974 = vpop.f32.mrb[0].mxu0
        %1975 = vmatprep.mubr.f32.mxu0 0.0
        %1976 = vmatmul.mubr.f32.gmra.mrb[0].mxu0 %v1530
        %v1977 = vpop.f32.mrb[0].mxu0
        %v1978 = vadd.f32 0.0, %v1977
        %v1979 = vpop.f32.mrb[0].mxu0
        %1980 = vmatprep.mubr.f32.mxu0 0.0
        %1981 = vmatmul.mubr.f32.gmra.mrb[0].mxu0 %v1531
        %v1982 = vpop.f32.mrb[0].mxu0
        %v1983 = vadd.f32 0.0, %v1982
        %v1984 = vpop.f32.mrb[0].mxu0
        %1985 = vmatprep.mubr.f32.mxu0 0.0
        %1986 = vmatmul.mubr.f32.gmra.mrb[0].mxu0 %v1532
        %v1987 = vpop.f32.mrb[0].mxu0
        %v1988 = vadd.f32 0.0, %v1987
        %v1989 = vpop.f32.mrb[0].mxu0
        %1990 = vmatprep.mubr.f32.mxu0 0.0
        %1991 = vmatmul.mubr.f32.gmra.mrb[0].mxu0 %v1533
        %v1992 = vpop.f32.mrb[0].mxu0
        %v1993 = vadd.f32 0.0, %v1992
        %v1994 = vpop.f32.mrb[0].mxu0
        %1995 = vmatprep.mubr.f32.mxu0 0.0
        %1996 = vmatmul.mubr.f32.gmra.mrb[0].mxu0 %v1534
        %v1997 = vpop.f32.mrb[0].mxu0
        %v1998 = vadd.f32 0.0, %v1997
        %v1999 = vpop.f32.mrb[0].mxu0
        %2000 = vmatprep.mubr.f32.mxu0 0.0
        %2001 = vmatmul.mubr.f32.gmra.mrb[0].mxu0 %v1535
        %v2002 = vpop.f32.mrb[0].mxu0
        %v2003 = vadd.f32 0.0, %v2002
        %v2004 = vpop.f32.mrb[0].mxu0
        %2005 = vmatprep.mubr.f32.mxu0 0.0
        %2006 = vmatmul.mubr.f32.gmra.mrb[0].mxu0 %v1536
        %v2007 = vpop.f32.mrb[0].mxu0
        %v2008 = vadd.f32 0.0, %v2007
        %v2009 = vpop.f32.mrb[0].mxu0
        %2010 = vmatprep.mubr.f32.mxu0 0.0
        %2011 = vmatmul.mubr.f32.gmra.mrb[0].mxu0 %v1537
        %v2012 = vpop.f32.mrb[0].mxu0
        %v2013 = vadd.f32 0.0, %v2012
        %v2014 = vpop.f32.mrb[0].mxu0
        %2015 = vmatprep.mubr.f32.mxu0 0.0
        %2016 = vmatmul.mubr.f32.gmra.mrb[0].mxu0 %v1538
        %v2017 = vpop.f32.mrb[0].mxu0
        %v2018 = vadd.f32 0.0, %v2017
        %v2019 = vpop.f32.mrb[0].mxu0
        %2020 = vmatprep.mubr.f32.mxu0 0.0
        %2021 = vmatmul.mubr.f32.gmra.mrb[0].mxu0 %v1539
        %v2022 = vpop.f32.mrb[0].mxu0
        %v2023 = vadd.f32 0.0, %v2022
        %v2024 = vpop.f32.mrb[0].mxu0
        %2025 = vmatprep.mubr.f32.mxu0 0.0
        %2026 = vmatmul.mubr.f32.gmra.mrb[0].mxu0 %v1540
        %v2027 = vpop.f32.mrb[0].mxu0
        %v2028 = vadd.f32 0.0, %v2027
        %v2029 = vpop.f32.mrb[0].mxu0
        %2030 = vmatprep.mubr.f32.mxu0 0.0
        %2031 = vmatmul.mubr.f32.gmra.mrb[0].mxu0 %v1541
        %v2032 = vpop.f32.mrb[0].mxu0
        %v2033 = vadd.f32 0.0, %v2032
        %v2034 = vpop.f32.mrb[0].mxu0
        %2035 = vmatprep.mubr.f32.mxu0 0.0
        %2036 = vmatmul.mubr.f32.gmra.mrb[0].mxu0 %v1542
        %v2037 = vpop.f32.mrb[0].mxu0
        %v2038 = vadd.f32 0.0, %v2037
        %v2039 = vpop.f32.mrb[0].mxu0
        %2040 = vmatprep.mubr.f32.mxu0 0.0
        %2041 = vmatmul.mubr.f32.gmra.mrb[0].mxu0 %v1543
        %v2042 = vpop.f32.mrb[0].mxu0
        %v2043 = vadd.f32 0.0, %v2042
        %v2044 = vpop.f32.mrb[0].mxu0
        %2045 = vdwg.mxu0
        %v2046 = vadd.f32 %v1449, %v1968
        %v2047 = vadd.f32 %v1454, %v1973
        %v2048 = vadd.f32 %v1459, %v1978
        %v2049 = vadd.f32 %v1464, %v1983
        %v2050 = vadd.f32 %v1469, %v1988
        %v2051 = vadd.f32 %v1474, %v1993
        %v2052 = vadd.f32 %v1479, %v1998
        %v2053 = vadd.f32 %v1484, %v2003
        %v2054 = vadd.f32 %v1489, %v2008
        %v2055 = vadd.f32 %v1494, %v2013
        %v2056 = vadd.f32 %v1499, %v2018
        %v2057 = vadd.f32 %v1504, %v2023
        %v2058 = vadd.f32 %v1509, %v2028
        %v2059 = vadd.f32 %v1514, %v2033
        %v2060 = vadd.f32 %v1519, %v2038
        %v2061 = vadd.f32 %v1524, %v2043
        %vm2078 = vcmask 1046528
        %v2079 = vrot.slane %v1868, 1
        %v2080 = vrot.slane %v1869, 1
        %v2081 = vsel %vm2078, %v2079, %v2080
        %v2082 = vrot.slane %v1870, 1
        %v2083 = vrot.slane %v1871, 1
        %v2084 = vsel %vm2078, %v2082, %v2083
        %v2085 = vrot.slane %v1872, 1
        %v2086 = vrot.slane %v1873, 1
        %v2087 = vsel %vm2078, %v2085, %v2086
        %v2088 = vrot.slane %v1874, 1
        %v2089 = vrot.slane %v1875, 1
        %v2090 = vsel %vm2078, %v2088, %v2089
        %v2091 = vrot.slane %v1876, 1
        %v2092 = vrot.slane %v1877, 1
        %v2093 = vsel %vm2078, %v2091, %v2092
        %v2094 = vrot.slane %v1878, 1
        %v2095 = vrot.slane %v1879, 1
        %v2096 = vsel %vm2078, %v2094, %v2095
        %v2097 = vrot.slane %v1880, 1
        %v2098 = vrot.slane %v1881, 1
        %v2099 = vsel %vm2078, %v2097, %v2098
        %v2100 = vrot.slane %v1882, 1
        %v2101 = vrot.slane %v1883, 1
        %v2102 = vsel %vm2078, %v2100, %v2101
        %v2111 = vadd.f32 %v1698, %v2081
        %v2112 = vadd.f32 %v1699, %v2084
        %v2113 = vadd.f32 %v1700, %v2087
        %v2114 = vadd.f32 %v1701, %v2090
        %v2115 = vadd.f32 %v1702, %v2093
        %v2116 = vadd.f32 %v1703, %v2096
        %v2117 = vadd.f32 %v1704, %v2099
        %v2118 = vadd.f32 %v1705, %v2102
        %vm2135 = vcmask 1045504
        %v2136 = vrot.slane %v2046, 2
        %v2137 = vrot.slane %v2047, 2
        %v2138 = vsel %vm2135, %v2136, %v2137
        %v2139 = vrot.slane %v2048, 2
        %v2140 = vrot.slane %v2049, 2
        %v2141 = vsel %vm2135, %v2139, %v2140
        %v2142 = vrot.slane %v2050, 2
        %v2143 = vrot.slane %v2051, 2
        %v2144 = vsel %vm2135, %v2142, %v2143
        %v2145 = vrot.slane %v2052, 2
        %v2146 = vrot.slane %v2053, 2
        %v2147 = vsel %vm2135, %v2145, %v2146
        %v2148 = vrot.slane %v2054, 2
        %v2149 = vrot.slane %v2055, 2
        %v2150 = vsel %vm2135, %v2148, %v2149
        %v2151 = vrot.slane %v2056, 2
        %v2152 = vrot.slane %v2057, 2
        %v2153 = vsel %vm2135, %v2151, %v2152
        %v2154 = vrot.slane %v2058, 2
        %v2155 = vrot.slane %v2059, 2
        %v2156 = vsel %vm2135, %v2154, %v2155
        %v2157 = vrot.slane %v2060, 2
        %v2158 = vrot.slane %v2061, 2
        %v2159 = vsel %vm2135, %v2157, %v2158
        %v2168 = vadd.f32 %v2111, %v2138
        %v2169 = vadd.f32 %v2112, %v2141
        %v2170 = vadd.f32 %v2113, %v2144
        %v2171 = vadd.f32 %v2114, %v2147
        %v2172 = vadd.f32 %v2115, %v2150
        %v2173 = vadd.f32 %v2116, %v2153
        %v2174 = vadd.f32 %v2117, %v2156
        %v2175 = vadd.f32 %v2118, %v2159
        %v2176 = vld [vmem:[%s5] sm:$0x1]
        %v2178 = vlaneseq
        %v2179 = vshrl.u32 %v2178, 7
        %v2180 = vsub.s32 0, %v2179
        %v2181 = vrot.slane %v2176, %v2180
        %v2183 = vadd.f32 %v2168, %v2181
        %v2184 = vadd.f32 %v2169, %v2181
        %v2185 = vadd.f32 %v2170, %v2181
        %v2186 = vadd.f32 %v2171, %v2181
        %v2187 = vadd.f32 %v2172, %v2181
        %v2188 = vadd.f32 %v2173, %v2181
        %v2189 = vadd.f32 %v2174, %v2181
        %v2190 = vadd.f32 %v2175, %v2181
        %v2191 = vmax.f32 %v2183, 0.0
        %v2192 = vmax.f32 %v2184, 0.0
        %v2193 = vmax.f32 %v2185, 0.0
        %v2194 = vmax.f32 %v2186, 0.0
        %v2195 = vmax.f32 %v2187, 0.0
        %v2196 = vmax.f32 %v2188, 0.0
        %v2197 = vmax.f32 %v2189, 0.0
        %v2198 = vmax.f32 %v2190, 0.0
        %v2199 = vld [vmem:[%s6] sm:$0xff]
        %v2200 = vld [vmem:[%s6 + $0x8] sm:$0xff]
        %v2201 = vld [vmem:[%s6 + $0x10] sm:$0xff]
        %v2202 = vld [vmem:[%s6 + $0x18] sm:$0xff]
        %v2203 = vld [vmem:[%s6 + $0x20] sm:$0xff]
        %v2204 = vld [vmem:[%s6 + $0x28] sm:$0xff]
        %v2205 = vld [vmem:[%s6 + $0x30] sm:$0xff]
        %v2206 = vld [vmem:[%s6 + $0x38] sm:$0xff]
        %v2207 = vld [vmem:[%s6 + $0x40] sm:$0xff]
        %v2208 = vld [vmem:[%s6 + $0x48] sm:$0xff]
        %v2209 = vld [vmem:[%s6 + $0x50] sm:$0xff]
        %v2210 = vld [vmem:[%s6 + $0x58] sm:$0xff]
        %v2211 = vld [vmem:[%s6 + $0x60] sm:$0xff]
        %v2212 = vld [vmem:[%s6 + $0x68] sm:$0xff]
        %v2213 = vld [vmem:[%s6 + $0x70] sm:$0xff]
        %v2214 = vld [vmem:[%s6 + $0x78] sm:$0xff]
        %v2215 = vld [vmem:[%s7] sm:$0x1]
        %v2217 = vlaneseq
        %v2218 = vshrl.u32 %v2217, 7
        %v2219 = vsub.s32 0, %v2218
        %v2220 = vrot.slane %v2215, %v2219
        %2222 = vmatprep.subr.mxu0 0.0
        %2223 = vmatpush1.msra.mxu0 %v2199
        %2224 = vmatprep.subr.mxu0 0.0
        %2225 = vmatpush1.msra.mxu0 %v2200
        %2226 = vmatprep.subr.mxu0 0.0
        %2227 = vmatpush1.msra.mxu0 %v2201
        %2228 = vmatprep.subr.mxu0 0.0
        %2229 = vmatpush1.msra.mxu0 %v2202
        %2230 = vmatprep.subr.mxu0 0.0
        %2231 = vmatpush1.msra.mxu0 %v2203
        %2232 = vmatprep.subr.mxu0 0.0
        %2233 = vmatpush1.msra.mxu0 %v2204
        %2234 = vmatprep.subr.mxu0 0.0
        %2235 = vmatpush1.msra.mxu0 %v2205
        %2236 = vmatprep.subr.mxu0 0.0
        %2237 = vmatpush1.msra.mxu0 %v2206
        %2238 = vmatprep.subr.mxu0 0.0
        %2239 = vmatpush1.msra.mxu0 %v2207
        %2240 = vmatprep.subr.mxu0 0.0
        %2241 = vmatpush1.msra.mxu0 %v2208
        %2242 = vmatprep.subr.mxu0 0.0
        %2243 = vmatpush1.msra.mxu0 %v2209
        %2244 = vmatprep.subr.mxu0 0.0
        %2245 = vmatpush1.msra.mxu0 %v2210
        %2246 = vmatprep.subr.mxu0 0.0
        %2247 = vmatpush1.msra.mxu0 %v2211
        %2248 = vmatprep.subr.mxu0 0.0
        %2249 = vmatpush1.msra.mxu0 %v2212
        %2250 = vmatprep.subr.mxu0 0.0
        %2251 = vmatpush1.msra.mxu0 %v2213
        %2252 = vmatprep.subr.mxu0 0.0
        %2253 = vmatpush1.msra.mxu0 %v2214
        %2254 = vmatprep.subr.mxu0 0.0
        %2255 = vmatpush1.msra.mxu0 0.0
        %2256 = vmatprep.subr.mxu0 0.0
        %2257 = vmatpush1.msra.mxu0 0.0
        %2258 = vmatprep.subr.mxu0 0.0
        %2259 = vmatpush1.msra.mxu0 0.0
        %2260 = vmatprep.subr.mxu0 0.0
        %2261 = vmatpush1.msra.mxu0 0.0
        %2262 = vmatprep.subr.mxu0 0.0
        %2263 = vmatpush1.msra.mxu0 0.0
        %2264 = vmatprep.subr.mxu0 0.0
        %2265 = vmatpush1.msra.mxu0 0.0
        %2266 = vmatprep.subr.mxu0 0.0
        %2267 = vmatpush1.msra.mxu0 0.0
        %2268 = vmatprep.subr.mxu0 0.0
        %2269 = vmatpush1.msra.mxu0 0.0
        %2270 = vmatprep.subr.mxu0 0.0
        %2271 = vmatpush1.msra.mxu0 0.0
        %2272 = vmatprep.subr.mxu0 0.0
        %2273 = vmatpush1.msra.mxu0 0.0
        %2274 = vmatprep.subr.mxu0 0.0
        %2275 = vmatpush1.msra.mxu0 0.0
        %2276 = vmatprep.subr.mxu0 0.0
        %2277 = vmatpush1.msra.mxu0 0.0
        %2278 = vmatprep.subr.mxu0 0.0
        %2279 = vmatpush1.msra.mxu0 0.0
        %2280 = vmatprep.subr.mxu0 0.0
        %2281 = vmatpush1.msra.mxu0 0.0
        %2282 = vmatprep.subr.mxu0 0.0
        %2283 = vmatpush1.msra.mxu0 0.0
        %2284 = vmatprep.subr.mxu0 0.0
        %2285 = vmatpush1.msra.mxu0 0.0
        %2286 = vmatprep.mubr.f32.mxu0 0.0
        %2287 = vmatmul.mubr.f32.gmra.mrb[0].mxu0 %v2191
        %v2288 = vpop.f32.mrb[0].mxu0
        %v2289 = vadd.f32 %v2220, %v2288
        %v2290 = vpop.f32.mrb[0].mxu0
        %2291 = vmatprep.mubr.f32.mxu0 0.0
        %2292 = vmatmul.mubr.f32.gmra.mrb[0].mxu0 %v2192
        %v2293 = vpop.f32.mrb[0].mxu0
        %v2294 = vadd.f32 %v2220, %v2293
        %v2295 = vpop.f32.mrb[0].mxu0
        %2296 = vmatprep.mubr.f32.mxu0 0.0
        %2297 = vmatmul.mubr.f32.gmra.mrb[0].mxu0 %v2193
        %v2298 = vpop.f32.mrb[0].mxu0
        %v2299 = vadd.f32 %v2220, %v2298
        %v2300 = vpop.f32.mrb[0].mxu0
        %2301 = vmatprep.mubr.f32.mxu0 0.0
        %2302 = vmatmul.mubr.f32.gmra.mrb[0].mxu0 %v2194
        %v2303 = vpop.f32.mrb[0].mxu0
        %v2304 = vadd.f32 %v2220, %v2303
        %v2305 = vpop.f32.mrb[0].mxu0
        %2306 = vmatprep.mubr.f32.mxu0 0.0
        %2307 = vmatmul.mubr.f32.gmra.mrb[0].mxu0 %v2195
        %v2308 = vpop.f32.mrb[0].mxu0
        %v2309 = vadd.f32 %v2220, %v2308
        %v2310 = vpop.f32.mrb[0].mxu0
        %2311 = vmatprep.mubr.f32.mxu0 0.0
        %2312 = vmatmul.mubr.f32.gmra.mrb[0].mxu0 %v2196
        %v2313 = vpop.f32.mrb[0].mxu0
        %v2314 = vadd.f32 %v2220, %v2313
        %v2315 = vpop.f32.mrb[0].mxu0
        %2316 = vmatprep.mubr.f32.mxu0 0.0
        %2317 = vmatmul.mubr.f32.gmra.mrb[0].mxu0 %v2197
        %v2318 = vpop.f32.mrb[0].mxu0
        %v2319 = vadd.f32 %v2220, %v2318
        %v2320 = vpop.f32.mrb[0].mxu0
        %2321 = vmatprep.mubr.f32.mxu0 0.0
        %2322 = vmatmul.mubr.f32.gmra.mrb[0].mxu0 %v2198
        %v2323 = vpop.f32.mrb[0].mxu0
        %v2324 = vadd.f32 %v2220, %v2323
        %v2325 = vpop.f32.mrb[0].mxu0
        %2326 = vdwg.mxu0
        %v2327 = vld [vmem:[%s299] sm:$0xff]
        %v2328 = vld [vmem:[%s299 + $0x8] sm:$0xff]
        %v2329 = vld [vmem:[%s299 + $0x10] sm:$0xff]
        %v2330 = vld [vmem:[%s299 + $0x18] sm:$0xff]
        %v2331 = vld [vmem:[%s299 + $0x20] sm:$0xff]
        %v2332 = vld [vmem:[%s299 + $0x28] sm:$0xff]
        %v2333 = vld [vmem:[%s299 + $0x30] sm:$0xff]
        %v2334 = vld [vmem:[%s299 + $0x38] sm:$0xff]
        %v2335 = vadd.f32 %v2289, %v2327
        %v2336 = vadd.f32 %v2294, %v2328
        %v2337 = vadd.f32 %v2299, %v2329
        %v2338 = vadd.f32 %v2304, %v2330
        %v2339 = vadd.f32 %v2309, %v2331
        %v2340 = vadd.f32 %v2314, %v2332
        %v2341 = vadd.f32 %v2319, %v2333
        %v2342 = vadd.f32 %v2324, %v2334
        %v2343 = vmax.f32 %v2335, 0.0
        %v2344 = vmax.f32 %v2336, 0.0
        %v2345 = vmax.f32 %v2337, 0.0
        %v2346 = vmax.f32 %v2338, 0.0
        %v2347 = vmax.f32 %v2339, 0.0
        %v2348 = vmax.f32 %v2340, 0.0
        %v2349 = vmax.f32 %v2341, 0.0
        %v2350 = vmax.f32 %v2342, 0.0
        %2351 = vst [vmem:[%s299] sm:$0xff] %v2343
        %2352 = vst [vmem:[%s299 + $0x8] sm:$0xff] %v2344
        %2353 = vst [vmem:[%s299 + $0x10] sm:$0xff] %v2345
        %2354 = vst [vmem:[%s299 + $0x18] sm:$0xff] %v2346
        %2355 = vst [vmem:[%s299 + $0x20] sm:$0xff] %v2347
        %2356 = vst [vmem:[%s299 + $0x28] sm:$0xff] %v2348
        %2357 = vst [vmem:[%s299 + $0x30] sm:$0xff] %v2349
        %2358 = vst [vmem:[%s299 + $0x38] sm:$0xff] %v2350
        %s2359 = sand.u32 %s203, 1
        %s2360 = scalar_lea.sflag [#allocation4], %s2359
        %s2361 = sand.u32 %s203, 1
        %s2362 = smul.addr %s2361, 64
        %s2363 = scalar_lea.vmem [#allocation3], %s2362
        // Predicated region
        $region53: #{bottleneck_forward.1} parent=51 // pred_check
          %p2364 = pneg %p213
        $region54: #{bottleneck_forward.1} parent=51 // pred_check_branch
          %2366 = sbr.rel (%p2364) target = $region56
        $region55: #{bottleneck_forward.1} parent=51 // pred_region
          %s2367 = smul.u32 8, %s22
          %s2369 = ssub.s32 1024, 1024
          %2370 = vsyncadd %s2360, %s2369
          %s2371 = smul.addr %s2367, 128
          %s2372 = scalar_lea.hbm %s8, %s2371
          %s2373 = sshll.u32 %s2363, 4
          %s2374 = int_to_ptr.vmem [resolvable:$true] %s2373
          %2379 = dma.vmem_to_hbm [thread:$0]  %s2374, 1024, %s2372, %s2360, 128, 128, 8
        $region56: #{bottleneck_forward.1} parent=51 // pred_fallthru
          _
      $region52: #{bottleneck_forward.1} parent=5 // pred_fallthru
        _
      %p2380 = scmp.le.s32.totalorder 2, %s17
      // Predicated region
      $region57: #{bottleneck_forward.1} parent=5 // pred_check
        %p2381 = pneg %p2380
      $region58: #{bottleneck_forward.1} parent=5 // pred_check_branch
        %2383 = sbr.rel (%p2381) target = $region60
      $region59: #{bottleneck_forward.1} parent=5 // pred_region
        %s2384 = ssub.s32 %s17, 2
        // Predicated region
        $region61: #{bottleneck_forward.1} parent=59 // pred_check
          %p2385 = pneg %p219
        $region62: #{bottleneck_forward.1} parent=59 // pred_check_branch
          %2387 = sbr.rel (%p2385) target = $region64
        $region63: #{bottleneck_forward.1} parent=59 // pred_region
          %s2388 = sand.u32 %s204, 1
          %s2389 = scalar_lea.sflag [#allocation4], %s2388
          %s2390 = sand.u32 %s204, 1
          %s2391 = smul.addr %s2390, 64
          %s2392 = scalar_lea.vmem [#allocation3], %s2391
          %2393 = dma.done %s2389, 1024
        $region64: #{bottleneck_forward.1} parent=59 // pred_fallthru
          _
      $region60: #{bottleneck_forward.1} parent=5 // pred_fallthru
        _
    $region6: #{bottleneck_forward.1} parent=1 // loop_footer
      %s21 = sadd.s32 1, %s17
    $region7: #{bottleneck_forward.1} parent=1 // loop_footer_branch
      %16 = sbr.rel target = $region3
    $region8: #{bottleneck_forward.1} parent=1 // loop_exit
      _
    %2394 = vsyncpa [#allocation4], 1
    %s2395 = scalar_lea.sflag [#allocation4], 1
    %2396 = vsyncpa %s2395, 1

</llo_original>
